<compile_context>
chip_gen: v7x
topology: tpu7x:2x2x1
jax: 0.10.0
libtpu: 0.0.40
codegen_flags: <defaults>
</compile_context>

<pallas_src>
import math

import jax
import jax.numpy as jnp
import numpy as np
from jax.experimental import pallas as pl
from jax.experimental.pallas import tpu as pltpu

_LANE = 128
_SUBLANE_BF16 = 16          # bf16 packs 2 rows per sublane -> 16-row batch alignment
_MIN_TB = 128
_MAX_TB = 2048


def _round_up(n, m):
    return ((n + m - 1) // m) * m


def _pad2(a, rows, cols):
    return jnp.pad(a, ((0, rows - a.shape[0]), (0, cols - a.shape[1])))


def _sigmoid(z, *, approx=True):
    # exp -> EUP; reciprocal -> EUP rcp path (frees VALU slots).  f32 only:
    # saturates gracefully (exp overflow -> inf -> reciprocal -> 0).
    return pl.reciprocal(1.0 + jnp.exp(-z), approx=approx)


def dbn_forward_kernel(x_ref, w1_ref, b1_ref, w2_ref, b2_ref,
                       w3_ref, b3_ref, wc_ref, bc_ref, out_ref):
    mm = w1_ref.dtype      # bf16 MXU operands; accumulation stays f32.
    x = x_ref[...]         # already pre-cast to mm in the wrapper (halves x DMA)

    # encoder: Linear -> Sigmoid -> Linear -> Sigmoid -> Linear   (epilogue in f32)
    h1 = _sigmoid(jnp.dot(x, w1_ref[...],
                          preferred_element_type=jnp.float32) + b1_ref[...])
    h2 = _sigmoid(jnp.dot(h1.astype(mm), w2_ref[...],
                          preferred_element_type=jnp.float32) + b2_ref[...])
    h3 = jnp.dot(h2.astype(mm), w3_ref[...],
                 preferred_element_type=jnp.float32) + b3_ref[...]

    # classifier: ReLU -> Linear -> Sigmoid (exact reciprocal on the output layer
    # for closer parity with the PyTorch reference; EUP is nowhere near binding).
    h3 = jnp.maximum(h3, 0.0)
    logits = jnp.dot(h3.astype(mm), wc_ref[...],
                     preferred_element_type=jnp.float32) + bc_ref[...]
    out_ref[...] = _sigmoid(logits, approx=False).astype(out_ref.dtype)


def _vmem_capacity_bytes():
    """Physical VMEM per TensorCore (v5e/v6e: 128 MiB, v7x: 64 MiB)."""
    try:
        return int(pltpu.get_tpu_info().vmem_capacity_bytes)
    except Exception:
        return 64 * 1024 * 1024   # conservative floor (v7x per-TC)


def dbn_forward(x, params, *, block_b=None, matmul_dtype=jnp.bfloat16,
                out_dtype=jnp.float32):
    """x: (B, input_size); params: dict of (in, out)-layout weights + (1, out) biases.

    block_b=None picks the largest multiple-of-128 batch tile whose working set
    fits ~3/4 of this generation's VMEM (capped at 2048).  Feature dims are
    zero-padded to multiples of 128 lanes (exact math; padded outputs sliced off).
    out_dtype=jnp.bfloat16 halves the output writeback if desired.
    """
    B, in_size = x.shape
    h1 = params["w1"].shape[1]
    h2 = params["w2"].shape[1]
    h3 = params["w3"].shape[1]
    out_size = params["wc"].shape[1]

    in_p = _round_up(in_size, _LANE)
    h1p = _round_up(h1, _LANE)
    h2p = _round_up(h2, _LANE)
    h3p = _round_up(h3, _LANE)
    out_p = _round_up(out_size, _LANE)

    w_item = jnp.dtype(matmul_dtype).itemsize
    x_item = w_item                                  # x streamed in matmul_dtype
    o_item = jnp.dtype(out_dtype).itemsize
    weight_elems = in_p * h1p + h1p * h2p + h2p * h3p + h3p * out_p
    bias_elems = h1p + h2p + h3p + out_p
    max_h = max(h1p, h2p, h3p, out_p)

    def vmem_est(tb, param_bufs):
        resident = param_bufs * (weight_elems * w_item + bias_elems * 4)
        streamed = 2 * tb * (in_p * x_item + out_p * o_item)   # x/out double buffers
        interm = 4 * tb * max_h * 4                            # f32 h1/h2/h3/logits
        return resident + streamed + interm

    # Generation-aware VMEM ceiling: ~3/4 of physical (v5e/v6e ~96 MiB, v7x ~48 MiB).
    vmem_cap = (_vmem_capacity_bytes() * 3) // 4

    # Batch tile: largest multiple of 128 whose working set fits the ceiling.
    if block_b is None:
        block_b = _MIN_TB
        while block_b < _MAX_TB and vmem_est(2 * block_b, 2) <= vmem_cap:
            block_b *= 2
    TB = _round_up(min(block_b, _round_up(B, _SUBLANE_BF16)), _SUBLANE_BF16)
    # v7x megacore: keep >=2 grid steps so ("parallel",) splits across both TCs.
    if B > _SUBLANE_BF16 and _round_up(B, TB) // TB < 2:
        TB = _round_up(-(-B // 2), _SUBLANE_BF16)
    B_pad = _round_up(B, TB)
    grid = (B_pad // TB,)

    # Zero-pad (exact); x & weights cast to bf16 (matmul operands), biases stay f32.
    x_p = _pad2(x.astype(jnp.float32), B_pad, in_p).astype(matmul_dtype)
    w1 = _pad2(params["w1"].astype(jnp.float32), in_p, h1p).astype(matmul_dtype)
    w2 = _pad2(params["w2"].astype(jnp.float32), h1p, h2p).astype(matmul_dtype)
    w3 = _pad2(params["w3"].astype(jnp.float32), h2p, h3p).astype(matmul_dtype)
    wc = _pad2(params["wc"].astype(jnp.float32), h3p, out_p).astype(matmul_dtype)
    b1 = _pad2(params["b1"].astype(jnp.float32), 1, h1p)
    b2 = _pad2(params["b2"].astype(jnp.float32), 1, h2p)
    b3 = _pad2(params["b3"].astype(jnp.float32), 1, h3p)
    bc = _pad2(params["bc"].astype(jnp.float32), 1, out_p)

    def run(param_mode):
        # Constant-index (VMEM-resident) params: optionally single-buffered.
        if param_mode is None:
            def res(shape):
                return pl.BlockSpec(shape, lambda i: (0, 0))
        else:
            def res(shape):
                return pl.BlockSpec(shape, lambda i: (0, 0), pipeline_mode=param_mode)

        in_specs = [
            pl.BlockSpec((TB, in_p), lambda i: (i, 0)),   # x tile (double-buffered)
            res((in_p, h1p)), res((1, h1p)),
            res((h1p, h2p)), res((1, h2p)),
            res((h2p, h3p)), res((1, h3p)),
            res((h3p, out_p)), res((1, out_p)),
        ]
        out_specs = pl.BlockSpec((TB, out_p), lambda i: (i, 0))

        param_bufs = 1 if param_mode is not None else 2
        est = vmem_est(TB, param_bufs)
        vmem_limit = int(min(max(2 * est, 16 * 1024 * 1024), vmem_cap))

        cost = pl.CostEstimate(
            flops=2 * B_pad * weight_elems,
            transcendentals=B_pad * (h1p + h2p + 2 * out_p),
            bytes_accessed=(B_pad * in_p * x_item + B_pad * out_p * o_item
                            + weight_elems * w_item + bias_elems * 4),
        )

        return pl.pallas_call(
            dbn_forward_kernel,
            out_shape=jax.ShapeDtypeStruct((B_pad, out_p), out_dtype),
            grid_spec=pltpu.PrefetchScalarGridSpec(
                num_scalar_prefetch=0,
                grid=grid,
                in_specs=in_specs,
                out_specs=out_specs,
            ),
            compiler_params=pltpu.CompilerParams(
                dimension_semantics=("parallel",),   # megacore split on v7x
                vmem_limit_bytes=vmem_limit,
            ),
            cost_estimate=cost,
        )(x_p, w1, b1, w2, b2, w3, b3, wc, bc)

    try:
        out_padded = run(pl.Buffered(1))     # single-buffer resident weights/biases
    except Exception:
        # Fallback for jax builds that reject pipeline_mode on pallas_call specs.
        out_padded = run(None)

    return out_padded[:B, :out_size]


def init_params(key, input_size, hidden1, hidden2, hidden3, output_size):
    """Deterministic parameter init mirroring the module's shapes.

    RBM layers: W ~ N(0, 4*sqrt(6/(nv+nh))), hb = 0 (their __init__ values).
    3rd encoder Linear & classifier Linear: PyTorch-default-style uniform init.
    All weights returned pre-transposed to (in_features, out_features).
    """
    k1, k2, k3, k4, k5, k6 = jax.random.split(key, 6)

    std1 = 4.0 * math.sqrt(6.0 / (input_size + hidden1))
    std2 = 4.0 * math.sqrt(6.0 / (hidden1 + hidden2))
    w1 = std1 * jax.random.normal(k1, (input_size, hidden1), jnp.float32)
    w2 = std2 * jax.random.normal(k2, (hidden2, hidden1), jnp.float32).T  # (h1, h2)
    b1 = jnp.zeros((1, hidden1), jnp.float32)   # hb has shape (1, n_hidden)
    b2 = jnp.zeros((1, hidden2), jnp.float32)

    bound3 = 1.0 / math.sqrt(hidden2)
    w3 = jax.random.uniform(k3, (hidden2, hidden3), jnp.float32, -bound3, bound3)
    b3 = jax.random.uniform(k4, (1, hidden3), jnp.float32, -bound3, bound3)

    boundc = 1.0 / math.sqrt(hidden3)
    wc = jax.random.uniform(k5, (hidden3, output_size), jnp.float32, -boundc, boundc)
    bc = jax.random.uniform(k6, (1, output_size), jnp.float32, -boundc, boundc)

    return dict(w1=w1, b1=b1, w2=w2, b2=b2, w3=w3, b3=b3, wc=wc, bc=bc)


def dbn_forward_ref(x, p):
    """Pure-JAX f32 reference for correctness checking."""
    h1 = jax.nn.sigmoid(x @ p["w1"] + p["b1"])
    h2 = jax.nn.sigmoid(h1 @ p["w2"] + p["b2"])
    h3 = h2 @ p["w3"] + p["b3"]
    h3 = jnp.maximum(h3, 0.0)
    return jax.nn.sigmoid(h3 @ p["wc"] + p["bc"])


if __name__ == "__main__":
    key = jax.random.PRNGKey(0)
    k_x, k_p = jax.random.split(key)

    # Small-model shapes; B=200 exercises batch padding and a >=2-step grid
    # (the v7x megacore rule halves the tile so both TCs get work).
    B = 200
    input_size, hidden1, hidden2, hidden3, output_size = 16, 32, 64, 32, 8

    x = jax.random.uniform(k_x, (B, input_size), jnp.float32)
    params = init_params(k_p, input_size, hidden1, hidden2, hidden3, output_size)

    out = jax.block_until_ready(dbn_forward(x, params))
    assert out.shape == (B, output_size)

    ref = dbn_forward_ref(x, params)
    # Tolerance accounts for bf16 matmul operands chained through four layers
    # plus the approx EUP reciprocal in the hidden-layer sigmoids.
    np.testing.assert_allclose(np.asarray(out), np.asarray(ref), rtol=0.0, atol=5e-2)

    print("KERNEL_OK")
</pallas_src>

<mosaic_0001>
module attributes {stable_mosaic.version = 11 : i64} {
  func.func @dbn_forward_kernel(%arg0: i32, %arg1: memref<112x128xbf16, #tpu.memory_space<vmem>>, %arg2: memref<128x128xbf16, #tpu.memory_space<vmem>>, %arg3: memref<1x128xf32, #tpu.memory_space<vmem>>, %arg4: memref<128x128xbf16, #tpu.memory_space<vmem>>, %arg5: memref<1x128xf32, #tpu.memory_space<vmem>>, %arg6: memref<128x128xbf16, #tpu.memory_space<vmem>>, %arg7: memref<1x128xf32, #tpu.memory_space<vmem>>, %arg8: memref<128x128xbf16, #tpu.memory_space<vmem>>, %arg9: memref<1x128xf32, #tpu.memory_space<vmem>>, %arg10: memref<112x128xf32, #tpu.memory_space<vmem>>) attributes {dimension_semantics = [#tpu.dimension_semantics<parallel>], iteration_bounds = array<i64: 2>, scalar_prefetch = 0 : i64, scratch_operands = 0 : i64, tpu.core_type = #tpu.core_type<tc>, window_params = [{transform_indices = @transform_0, window_bounds = array<i64: 112, 128>}, {pipeline_mode = #tpu.pipeline_mode<synchronous>, transform_indices = @transform_1, window_bounds = array<i64: 128, 128>}, {pipeline_mode = #tpu.pipeline_mode<synchronous>, transform_indices = @transform_2, window_bounds = array<i64: 1, 128>}, {pipeline_mode = #tpu.pipeline_mode<synchronous>, transform_indices = @transform_3, window_bounds = array<i64: 128, 128>}, {pipeline_mode = #tpu.pipeline_mode<synchronous>, transform_indices = @transform_4, window_bounds = array<i64: 1, 128>}, {pipeline_mode = #tpu.pipeline_mode<synchronous>, transform_indices = @transform_5, window_bounds = array<i64: 128, 128>}, {pipeline_mode = #tpu.pipeline_mode<synchronous>, transform_indices = @transform_6, window_bounds = array<i64: 1, 128>}, {pipeline_mode = #tpu.pipeline_mode<synchronous>, transform_indices = @transform_7, window_bounds = array<i64: 128, 128>}, {pipeline_mode = #tpu.pipeline_mode<synchronous>, transform_indices = @transform_8, window_bounds = array<i64: 1, 128>}, {transform_indices = @transform_9, window_bounds = array<i64: 112, 128>}]} {
    %c0 = arith.constant 0 : index
    %c0_0 = arith.constant 0 : index
    %0 = vector.load %arg1[%c0, %c0_0] : memref<112x128xbf16, #tpu.memory_space<vmem>>, vector<112x128xbf16>
    %c0_1 = arith.constant 0 : index
    %c0_2 = arith.constant 0 : index
    %1 = vector.load %arg2[%c0_1, %c0_2] : memref<128x128xbf16, #tpu.memory_space<vmem>>, vector<128x128xbf16>
    %cst = arith.constant dense<0.000000e+00> : vector<112x128xf32>
    %2 = tpu.matmul %0, %1, %cst {dimension_numbers = #tpu.dot_dimension_numbers<[1], [0], [0], [1], [0, 0, 1, 1], [], []>} : vector<112x128xbf16>, vector<128x128xbf16>, vector<112x128xf32> -> vector<112x128xf32>
    %c0_3 = arith.constant 0 : index
    %c0_4 = arith.constant 0 : index
    %3 = vector.load %arg3[%c0_3, %c0_4] : memref<1x128xf32, #tpu.memory_space<vmem>>, vector<1x128xf32>
    %4 = vector.broadcast %3 : vector<1x128xf32> to vector<112x128xf32>
    %5 = arith.addf %2, %4 : vector<112x128xf32>
    %cst_5 = arith.constant 0.000000e+00 : f32
    %6 = vector.broadcast %cst_5 : f32 to vector<112x128xf32>
    %7 = arith.subf %6, %5 : vector<112x128xf32>
    %8 = math.exp %7 : vector<112x128xf32>
    %cst_6 = arith.constant 1.000000e+00 : f32
    %9 = vector.broadcast %cst_6 : f32 to vector<112x128xf32>
    %10 = arith.addf %9, %8 : vector<112x128xf32>
    %11 = tpu.reciprocal %10 {approx = true} : vector<112x128xf32> -> vector<112x128xf32>
    %12 = arith.truncf %11 : vector<112x128xf32> to vector<112x128xbf16>
    %c0_7 = arith.constant 0 : index
    %c0_8 = arith.constant 0 : index
    %13 = vector.load %arg4[%c0_7, %c0_8] : memref<128x128xbf16, #tpu.memory_space<vmem>>, vector<128x128xbf16>
    %cst_9 = arith.constant dense<0.000000e+00> : vector<112x128xf32>
    %14 = tpu.matmul %12, %13, %cst_9 {dimension_numbers = #tpu.dot_dimension_numbers<[1], [0], [0], [1], [0, 0, 1, 1], [], []>} : vector<112x128xbf16>, vector<128x128xbf16>, vector<112x128xf32> -> vector<112x128xf32>
    %c0_10 = arith.constant 0 : index
    %c0_11 = arith.constant 0 : index
    %15 = vector.load %arg5[%c0_10, %c0_11] : memref<1x128xf32, #tpu.memory_space<vmem>>, vector<1x128xf32>
    %16 = vector.broadcast %15 : vector<1x128xf32> to vector<112x128xf32>
    %17 = arith.addf %14, %16 : vector<112x128xf32>
    %cst_12 = arith.constant 0.000000e+00 : f32
    %18 = vector.broadcast %cst_12 : f32 to vector<112x128xf32>
    %19 = arith.subf %18, %17 : vector<112x128xf32>
    %20 = math.exp %19 : vector<112x128xf32>
    %cst_13 = arith.constant 1.000000e+00 : f32
    %21 = vector.broadcast %cst_13 : f32 to vector<112x128xf32>
    %22 = arith.addf %21, %20 : vector<112x128xf32>
    %23 = tpu.reciprocal %22 {approx = true} : vector<112x128xf32> -> vector<112x128xf32>
    %24 = arith.truncf %23 : vector<112x128xf32> to vector<112x128xbf16>
    %c0_14 = arith.constant 0 : index
    %c0_15 = arith.constant 0 : index
    %25 = vector.load %arg6[%c0_14, %c0_15] : memref<128x128xbf16, #tpu.memory_space<vmem>>, vector<128x128xbf16>
    %cst_16 = arith.constant dense<0.000000e+00> : vector<112x128xf32>
    %26 = tpu.matmul %24, %25, %cst_16 {dimension_numbers = #tpu.dot_dimension_numbers<[1], [0], [0], [1], [0, 0, 1, 1], [], []>} : vector<112x128xbf16>, vector<128x128xbf16>, vector<112x128xf32> -> vector<112x128xf32>
    %c0_17 = arith.constant 0 : index
    %c0_18 = arith.constant 0 : index
    %27 = vector.load %arg7[%c0_17, %c0_18] : memref<1x128xf32, #tpu.memory_space<vmem>>, vector<1x128xf32>
    %28 = vector.broadcast %27 : vector<1x128xf32> to vector<112x128xf32>
    %29 = arith.addf %26, %28 : vector<112x128xf32>
    %cst_19 = arith.constant 0.000000e+00 : f32
    %30 = vector.broadcast %cst_19 : f32 to vector<112x128xf32>
    %31 = arith.maximumf %29, %30 : vector<112x128xf32>
    %32 = arith.truncf %31 : vector<112x128xf32> to vector<112x128xbf16>
    %c0_20 = arith.constant 0 : index
    %c0_21 = arith.constant 0 : index
    %33 = vector.load %arg8[%c0_20, %c0_21] : memref<128x128xbf16, #tpu.memory_space<vmem>>, vector<128x128xbf16>
    %cst_22 = arith.constant dense<0.000000e+00> : vector<112x128xf32>
    %34 = tpu.matmul %32, %33, %cst_22 {dimension_numbers = #tpu.dot_dimension_numbers<[1], [0], [0], [1], [0, 0, 1, 1], [], []>} : vector<112x128xbf16>, vector<128x128xbf16>, vector<112x128xf32> -> vector<112x128xf32>
    %c0_23 = arith.constant 0 : index
    %c0_24 = arith.constant 0 : index
    %35 = vector.load %arg9[%c0_23, %c0_24] : memref<1x128xf32, #tpu.memory_space<vmem>>, vector<1x128xf32>
    %36 = vector.broadcast %35 : vector<1x128xf32> to vector<112x128xf32>
    %37 = arith.addf %34, %36 : vector<112x128xf32>
    %cst_25 = arith.constant 0.000000e+00 : f32
    %38 = vector.broadcast %cst_25 : f32 to vector<112x128xf32>
    %39 = arith.subf %38, %37 : vector<112x128xf32>
    %40 = math.exp %39 : vector<112x128xf32>
    %cst_26 = arith.constant 1.000000e+00 : f32
    %41 = vector.broadcast %cst_26 : f32 to vector<112x128xf32>
    %42 = arith.addf %41, %40 : vector<112x128xf32>
    %43 = tpu.reciprocal %42 : vector<112x128xf32> -> vector<112x128xf32>
    %c0_27 = arith.constant 0 : index
    %c0_28 = arith.constant 0 : index
    %44 = vector.load %arg10[%c0_27, %c0_28] : memref<112x128xf32, #tpu.memory_space<vmem>>, vector<112x128xf32>
    tpu.vector_store %arg10[%c0_27, %c0_28], %43 {strides = array<i32>} : memref<112x128xf32, #tpu.memory_space<vmem>>, vector<112x128xf32>,
    return
  }
  func.func @transform_0(%arg0: i32) -> (i32, i32) {
    %c0_i32 = arith.constant 0 : i32
    %c0_i32_0 = arith.constant 0 : i32
    return %arg0, %c0_i32 : i32, i32
  }
  func.func @transform_1(%arg0: i32) -> (i32, i32) {
    %c0_i32 = arith.constant 0 : i32
    %c0_i32_0 = arith.constant 0 : i32
    %c0_i32_1 = arith.constant 0 : i32
    return %c0_i32, %c0_i32_0 : i32, i32
  }
  func.func @transform_2(%arg0: i32) -> (i32, i32) {
    %c0_i32 = arith.constant 0 : i32
    %c0_i32_0 = arith.constant 0 : i32
    %c0_i32_1 = arith.constant 0 : i32
    return %c0_i32, %c0_i32_0 : i32, i32
  }
  func.func @transform_3(%arg0: i32) -> (i32, i32) {
    %c0_i32 = arith.constant 0 : i32
    %c0_i32_0 = arith.constant 0 : i32
    %c0_i32_1 = arith.constant 0 : i32
    return %c0_i32, %c0_i32_0 : i32, i32
  }
  func.func @transform_4(%arg0: i32) -> (i32, i32) {
    %c0_i32 = arith.constant 0 : i32
    %c0_i32_0 = arith.constant 0 : i32
    %c0_i32_1 = arith.constant 0 : i32
    return %c0_i32, %c0_i32_0 : i32, i32
  }
  func.func @transform_5(%arg0: i32) -> (i32, i32) {
    %c0_i32 = arith.constant 0 : i32
    %c0_i32_0 = arith.constant 0 : i32
    %c0_i32_1 = arith.constant 0 : i32
    return %c0_i32, %c0_i32_0 : i32, i32
  }
  func.func @transform_6(%arg0: i32) -> (i32, i32) {
    %c0_i32 = arith.constant 0 : i32
    %c0_i32_0 = arith.constant 0 : i32
    %c0_i32_1 = arith.constant 0 : i32
    return %c0_i32, %c0_i32_0 : i32, i32
  }
  func.func @transform_7(%arg0: i32) -> (i32, i32) {
    %c0_i32 = arith.constant 0 : i32
    %c0_i32_0 = arith.constant 0 : i32
    %c0_i32_1 = arith.constant 0 : i32
    return %c0_i32, %c0_i32_0 : i32, i32
  }
  func.func @transform_8(%arg0: i32) -> (i32, i32) {
    %c0_i32 = arith.constant 0 : i32
    %c0_i32_0 = arith.constant 0 : i32
    %c0_i32_1 = arith.constant 0 : i32
    return %c0_i32, %c0_i32_0 : i32, i32
  }
  func.func @transform_9(%arg0: i32) -> (i32, i32) {
    %c0_i32 = arith.constant 0 : i32
    %c0_i32_0 = arith.constant 0 : i32
    return %arg0, %c0_i32 : i32, i32
  }
}

module attributes {stable_mosaic.version = 11 : i64} {
  func.func @dbn_forward_kernel(%arg0: i32, %arg1: memref<112x128xbf16, #tpu.memory_space<vmem>>, %arg2: memref<128x128xbf16, #tpu.memory_space<vmem>>, %arg3: memref<1x128xf32, #tpu.memory_space<vmem>>, %arg4: memref<128x128xbf16, #tpu.memory_space<vmem>>, %arg5: memref<1x128xf32, #tpu.memory_space<vmem>>, %arg6: memref<128x128xbf16, #tpu.memory_space<vmem>>, %arg7: memref<1x128xf32, #tpu.memory_space<vmem>>, %arg8: memref<128x128xbf16, #tpu.memory_space<vmem>>, %arg9: memref<1x128xf32, #tpu.memory_space<vmem>>, %arg10: memref<112x128xf32, #tpu.memory_space<vmem>>) attributes {dimension_semantics = [#tpu.dimension_semantics<parallel>], iteration_bounds = array<i64: 2>, scalar_prefetch = 0 : i64, scratch_operands = 0 : i64, tpu.core_type = #tpu.core_type<tc>, window_params = [{transform_indices = @transform_0, window_bounds = array<i64: 112, 128>}, {pipeline_mode = #tpu.pipeline_mode<synchronous>, transform_indices = @transform_1, window_bounds = array<i64: 128, 128>}, {pipeline_mode = #tpu.pipeline_mode<synchronous>, transform_indices = @transform_2, window_bounds = array<i64: 1, 128>}, {pipeline_mode = #tpu.pipeline_mode<synchronous>, transform_indices = @transform_3, window_bounds = array<i64: 128, 128>}, {pipeline_mode = #tpu.pipeline_mode<synchronous>, transform_indices = @transform_4, window_bounds = array<i64: 1, 128>}, {pipeline_mode = #tpu.pipeline_mode<synchronous>, transform_indices = @transform_5, window_bounds = array<i64: 128, 128>}, {pipeline_mode = #tpu.pipeline_mode<synchronous>, transform_indices = @transform_6, window_bounds = array<i64: 1, 128>}, {pipeline_mode = #tpu.pipeline_mode<synchronous>, transform_indices = @transform_7, window_bounds = array<i64: 128, 128>}, {pipeline_mode = #tpu.pipeline_mode<synchronous>, transform_indices = @transform_8, window_bounds = array<i64: 1, 128>}, {transform_indices = @transform_9, window_bounds = array<i64: 112, 128>}]} {
    %c0 = arith.constant 0 : index
    %c0_0 = arith.constant 0 : index
    %0 = vector.load %arg1[%c0, %c0_0] : memref<112x128xbf16, #tpu.memory_space<vmem>>, vector<112x128xbf16>
    %c0_1 = arith.constant 0 : index
    %c0_2 = arith.constant 0 : index
    %1 = vector.load %arg2[%c0_1, %c0_2] : memref<128x128xbf16, #tpu.memory_space<vmem>>, vector<128x128xbf16>
    %cst = arith.constant dense<0.000000e+00> : vector<112x128xf32>
    %2 = tpu.matmul %0, %1, %cst {dimension_numbers = #tpu.dot_dimension_numbers<[1], [0], [0], [1], [0, 0, 1, 1], [], []>} : vector<112x128xbf16>, vector<128x128xbf16>, vector<112x128xf32> -> vector<112x128xf32>
    %c0_3 = arith.constant 0 : index
    %c0_4 = arith.constant 0 : index
    %3 = vector.load %arg3[%c0_3, %c0_4] : memref<1x128xf32, #tpu.memory_space<vmem>>, vector<1x128xf32>
    %4 = vector.broadcast %3 : vector<1x128xf32> to vector<112x128xf32>
    %5 = arith.addf %2, %4 : vector<112x128xf32>
    %cst_5 = arith.constant 0.000000e+00 : f32
    %6 = vector.broadcast %cst_5 : f32 to vector<112x128xf32>
    %7 = arith.subf %6, %5 : vector<112x128xf32>
    %8 = math.exp %7 : vector<112x128xf32>
    %cst_6 = arith.constant 1.000000e+00 : f32
    %9 = vector.broadcast %cst_6 : f32 to vector<112x128xf32>
    %10 = arith.addf %9, %8 : vector<112x128xf32>
    %11 = tpu.reciprocal %10 {approx = true} : vector<112x128xf32> -> vector<112x128xf32>
    %12 = arith.truncf %11 : vector<112x128xf32> to vector<112x128xbf16>
    %c0_7 = arith.constant 0 : index
    %c0_8 = arith.constant 0 : index
    %13 = vector.load %arg4[%c0_7, %c0_8] : memref<128x128xbf16, #tpu.memory_space<vmem>>, vector<128x128xbf16>
    %cst_9 = arith.constant dense<0.000000e+00> : vector<112x128xf32>
    %14 = tpu.matmul %12, %13, %cst_9 {dimension_numbers = #tpu.dot_dimension_numbers<[1], [0], [0], [1], [0, 0, 1, 1], [], []>} : vector<112x128xbf16>, vector<128x128xbf16>, vector<112x128xf32> -> vector<112x128xf32>
    %c0_10 = arith.constant 0 : index
    %c0_11 = arith.constant 0 : index
    %15 = vector.load %arg5[%c0_10, %c0_11] : memref<1x128xf32, #tpu.memory_space<vmem>>, vector<1x128xf32>
    %16 = vector.broadcast %15 : vector<1x128xf32> to vector<112x128xf32>
    %17 = arith.addf %14, %16 : vector<112x128xf32>
    %cst_12 = arith.constant 0.000000e+00 : f32
    %18 = vector.broadcast %cst_12 : f32 to vector<112x128xf32>
    %19 = arith.subf %18, %17 : vector<112x128xf32>
    %20 = math.exp %19 : vector<112x128xf32>
    %cst_13 = arith.constant 1.000000e+00 : f32
    %21 = vector.broadcast %cst_13 : f32 to vector<112x128xf32>
    %22 = arith.addf %21, %20 : vector<112x128xf32>
    %23 = tpu.reciprocal %22 {approx = true} : vector<112x128xf32> -> vector<112x128xf32>
    %24 = arith.truncf %23 : vector<112x128xf32> to vector<112x128xbf16>
    %c0_14 = arith.constant 0 : index
    %c0_15 = arith.constant 0 : index
    %25 = vector.load %arg6[%c0_14, %c0_15] : memref<128x128xbf16, #tpu.memory_space<vmem>>, vector<128x128xbf16>
    %cst_16 = arith.constant dense<0.000000e+00> : vector<112x128xf32>
    %26 = tpu.matmul %24, %25, %cst_16 {dimension_numbers = #tpu.dot_dimension_numbers<[1], [0], [0], [1], [0, 0, 1, 1], [], []>} : vector<112x128xbf16>, vector<128x128xbf16>, vector<112x128xf32> -> vector<112x128xf32>
    %c0_17 = arith.constant 0 : index
    %c0_18 = arith.constant 0 : index
    %27 = vector.load %arg7[%c0_17, %c0_18] : memref<1x128xf32, #tpu.memory_space<vmem>>, vector<1x128xf32>
    %28 = vector.broadcast %27 : vector<1x128xf32> to vector<112x128xf32>
    %29 = arith.addf %26, %28 : vector<112x128xf32>
    %cst_19 = arith.constant 0.000000e+00 : f32
    %30 = vector.broadcast %cst_19 : f32 to vector<112x128xf32>
    %31 = arith.maximumf %29, %30 : vector<112x128xf32>
    %32 = arith.truncf %31 : vector<112x128xf32> to vector<112x128xbf16>
    %c0_20 = arith.constant 0 : index
    %c0_21 = arith.constant 0 : index
    %33 = vector.load %arg8[%c0_20, %c0_21] : memref<128x128xbf16, #tpu.memory_space<vmem>>, vector<128x128xbf16>
    %cst_22 = arith.constant dense<0.000000e+00> : vector<112x128xf32>
    %34 = tpu.matmul %32, %33, %cst_22 {dimension_numbers = #tpu.dot_dimension_numbers<[1], [0], [0], [1], [0, 0, 1, 1], [], []>} : vector<112x128xbf16>, vector<128x128xbf16>, vector<112x128xf32> -> vector<112x128xf32>
    %c0_23 = arith.constant 0 : index
    %c0_24 = arith.constant 0 : index
    %35 = vector.load %arg9[%c0_23, %c0_24] : memref<1x128xf32, #tpu.memory_space<vmem>>, vector<1x128xf32>
    %36 = vector.broadcast %35 : vector<1x128xf32> to vector<112x128xf32>
    %37 = arith.addf %34, %36 : vector<112x128xf32>
    %cst_25 = arith.constant 0.000000e+00 : f32
    %38 = vector.broadcast %cst_25 : f32 to vector<112x128xf32>
    %39 = arith.subf %38, %37 : vector<112x128xf32>
    %40 = math.exp %39 : vector<112x128xf32>
    %cst_26 = arith.constant 1.000000e+00 : f32
    %41 = vector.broadcast %cst_26 : f32 to vector<112x128xf32>
    %42 = arith.addf %41, %40 : vector<112x128xf32>
    %43 = tpu.reciprocal %42 : vector<112x128xf32> -> vector<112x128xf32>
    %c0_27 = arith.constant 0 : index
    %c0_28 = arith.constant 0 : index
    %44 = vector.load %arg10[%c0_27, %c0_28] : memref<112x128xf32, #tpu.memory_space<vmem>>, vector<112x128xf32>
    tpu.vector_store %arg10[%c0_27, %c0_28], %43 {strides = array<i32>} : memref<112x128xf32, #tpu.memory_space<vmem>>, vector<112x128xf32>,
    return
  }
  func.func @transform_0(%arg0: i32) -> (i32, i32) {
    %c0_i32 = arith.constant 0 : i32
    %c0_i32_0 = arith.constant 0 : i32
    return %arg0, %c0_i32 : i32, i32
  }
  func.func @transform_1(%arg0: i32) -> (i32, i32) {
    %c0_i32 = arith.constant 0 : i32
    %c0_i32_0 = arith.constant 0 : i32
    %c0_i32_1 = arith.constant 0 : i32
    return %c0_i32, %c0_i32_0 : i32, i32
  }
  func.func @transform_2(%arg0: i32) -> (i32, i32) {
    %c0_i32 = arith.constant 0 : i32
    %c0_i32_0 = arith.constant 0 : i32
    %c0_i32_1 = arith.constant 0 : i32
    return %c0_i32, %c0_i32_0 : i32, i32
  }
  func.func @transform_3(%arg0: i32) -> (i32, i32) {
    %c0_i32 = arith.constant 0 : i32
    %c0_i32_0 = arith.constant 0 : i32
    %c0_i32_1 = arith.constant 0 : i32
    return %c0_i32, %c0_i32_0 : i32, i32
  }
  func.func @transform_4(%arg0: i32) -> (i32, i32) {
    %c0_i32 = arith.constant 0 : i32
    %c0_i32_0 = arith.constant 0 : i32
    %c0_i32_1 = arith.constant 0 : i32
    return %c0_i32, %c0_i32_0 : i32, i32
  }
  func.func @transform_5(%arg0: i32) -> (i32, i32) {
    %c0_i32 = arith.constant 0 : i32
    %c0_i32_0 = arith.constant 0 : i32
    %c0_i32_1 = arith.constant 0 : i32
    return %c0_i32, %c0_i32_0 : i32, i32
  }
  func.func @transform_6(%arg0: i32) -> (i32, i32) {
    %c0_i32 = arith.constant 0 : i32
    %c0_i32_0 = arith.constant 0 : i32
    %c0_i32_1 = arith.constant 0 : i32
    return %c0_i32, %c0_i32_0 : i32, i32
  }
  func.func @transform_7(%arg0: i32) -> (i32, i32) {
    %c0_i32 = arith.constant 0 : i32
    %c0_i32_0 = arith.constant 0 : i32
    %c0_i32_1 = arith.constant 0 : i32
    return %c0_i32, %c0_i32_0 : i32, i32
  }
  func.func @transform_8(%arg0: i32) -> (i32, i32) {
    %c0_i32 = arith.constant 0 : i32
    %c0_i32_0 = arith.constant 0 : i32
    %c0_i32_1 = arith.constant 0 : i32
    return %c0_i32, %c0_i32_0 : i32, i32
  }
  func.func @transform_9(%arg0: i32) -> (i32, i32) {
    %c0_i32 = arith.constant 0 : i32
    %c0_i32_0 = arith.constant 0 : i32
    return %arg0, %c0_i32 : i32, i32
  }
}

</mosaic_0001>

<llo_original>
// kernel: tpu_custom_call.1
$region0: #{tpu_custom_call.1}
  #allocation0 [shape = 'u32[]', space=smem, size = 0x4, offset = 0x4, fixed_abs, tag = 'smem constant byte address 0x4 - core index']
  #allocation1 [shape = 'u32[144,128]{1,0:T(1,128)}', space=vmem, size = 0x12000, scoped, tag = 'internal scratch']
  %s0 = inlined_call_operand.hbm [shape: bf16[224,128], index: 0, kind: input, shape index: {}]
  %s1 = inlined_call_operand.hbm [shape: bf16[128,128], index: 1, kind: input, shape index: {}]
  %s2 = inlined_call_operand.vmem [shape: f32[1,128], index: 2, kind: input, shape index: {}]
  %s3 = inlined_call_operand.hbm [shape: bf16[128,128], index: 3, kind: input, shape index: {}]
  %s4 = inlined_call_operand.vmem [shape: f32[1,128], index: 4, kind: input, shape index: {}]
  %s5 = inlined_call_operand.hbm [shape: bf16[128,128], index: 5, kind: input, shape index: {}]
  %s6 = inlined_call_operand.vmem [shape: f32[1,128], index: 6, kind: input, shape index: {}]
  %s7 = inlined_call_operand.hbm [shape: bf16[128,128], index: 7, kind: input, shape index: {}]
  %s8 = inlined_call_operand.vmem [shape: f32[1,128], index: 8, kind: input, shape index: {}]
  %s9 = inlined_call_operand.hbm [shape: f32[224,128], index: 9, kind: output, shape index: {}]
  %s10 = sld [smem:[#allocation0]]
  $region89: #{tpu_custom_call.1} parent=0
    _
  %s12 = ssub.s32 1, %s10
  %s13 = scalar_select 0, %s12, %s10
  $region1: #{tpu_custom_call.1} parent=0
    #allocation2 [shape = 'u8[57344]{0}', space=vmem, size = 0xe000, scoped, tag = 'input window, operand 0']
    #allocation3 [shape = 's32[2]{0}', space=sflag, size = 0x8, scoped, tag = 'scoped memory for tpu_custom_call.1']
    #allocation4 [shape = 's32[2]{0}', space=sflag, size = 0x8, scoped, tag = 'scoped memory for tpu_custom_call.1']
    #allocation5 [shape = 'u8[32768]{0}', space=vmem, size = 0x8000, scoped, tag = 'input window, operand 1, single buffered']
    #allocation6 [shape = 's32[1]{0}', space=sflag, size = 0x4, scoped, tag = 'scoped memory for tpu_custom_call.1']
    #allocation7 [shape = 'u8[32768]{0}', space=vmem, size = 0x8000, scoped, tag = 'input window, operand 3, single buffered']
    #allocation8 [shape = 'u8[32768]{0}', space=vmem, size = 0x8000, scoped, tag = 'input window, operand 5, single buffered']
    #allocation9 [shape = 's32[1]{0}', space=sflag, size = 0x4, scoped, tag = 'scoped memory for tpu_custom_call.1']
    #allocation10 [shape = 'u8[32768]{0}', space=vmem, size = 0x8000, scoped, tag = 'input window, operand 7, single buffered']
    #allocation11 [shape = 'u8[114688]{0}', space=vmem, size = 0x1c000, scoped, tag = 'output window, operand 0']
    %14 = vsyncpa [#allocation3], 0
    %s15 = scalar_lea.sflag [#allocation3], 1
    %16 = vsyncpa %s15, 0
    %17 = vsyncpa [#allocation6], 0
    %18 = vsyncpa [#allocation9], 0
    %19 = vsyncpa [#allocation4], 0
    %s20 = scalar_lea.sflag [#allocation4], 1
    %21 = vsyncpa %s20, 0
    loop: start=0, step=1, limit=4
    $region2: #{tpu_custom_call.1} parent=1 // loop_pre_header
      _
    $region3: #{tpu_custom_call.1} parent=1 // loop_header
      %s23 = sphi 0, %s27
      %p24 = scmp.ge.s32.totalorder %s23, 4
      %s33 = sphi 0, %s35
      %s36 = sphi 0, %s33
      %s37 = sphi 0, %s36
      %s53 = sphi 0, %s37
      %s57 = sphi 0, %s57
      %s59 = sphi 0, %s57
      %s60 = sphi 0, %s59
      %s74 = sphi 0, %s60
      %s78 = sphi 0, %s78
      %s80 = sphi 0, %s78
      %s81 = sphi 0, %s80
      %s95 = sphi 0, %s81
      %s99 = sphi 0, %s99
      %s101 = sphi 0, %s99
      %s102 = sphi 0, %s101
      %s116 = sphi 0, %s102
      %s120 = sphi 0, %s120
      %s122 = sphi 0, %s120
      %s123 = sphi 0, %s122
      %s137 = sphi 0, %s123
      %s141 = sphi 0, %s141
      %s143 = sphi 0, %s141
      %s144 = sphi 0, %s143
      %s158 = sphi 0, %s144
      %s162 = sphi 0, %s162
      %s164 = sphi 0, %s162
      %s165 = sphi 0, %s164
      %s179 = sphi 0, %s165
      %s183 = sphi 0, %s183
      %s185 = sphi 0, %s183
      %s186 = sphi 0, %s185
      %s200 = sphi 0, %s186
      %s204 = sphi 0, %s204
      %s206 = sphi 0, %s204
      %s207 = sphi 0, %s206
      %s221 = sphi 0, %s207
      %s227 = sphi 0, %s229
      %s230 = sphi 0, %s227
      %s231 = sphi 0, %s230
      %s247 = sphi 0, %s231
    $region4: #{tpu_custom_call.1} parent=1 // loop_header_branch
      %26 = sbr.rel (%p24) target = $region8
    $region5: #{tpu_custom_call.1} parent=1 // loop_body
      %s28 = ssub.s32 %s23, 1
      %s29 = ssub.s32 %s23, 2
      %s30 = sadd.s32 %s23, 1
      %s31 = ssub.s32 %s23, %s30
      %p32 = scmp.eq.s32.totalorder %s31, 0
      %s34 = sadd.s32 %s33, 1
      %s35 = scalar_select %p32, %s33, %s34
      %p38 = pneg %p32
      %p39 = scmp.eq.s32.totalorder %s23, 1
      %p40 = por %p38, %p39
      %p41 = scmp.ne.s32.totalorder %s33, %s36
      %p42 = scmp.eq.s32.totalorder %s23, 0
      %p43 = por %p41, %p42
      %p44 = scmp.ne.s32.totalorder %s33, %s36
      %p45 = scmp.eq.s32.totalorder %s28, 1
      %p46 = por %p44, %p45
      %p47 = scmp.ne.s32.totalorder %s36, %s37
      %p48 = scmp.eq.s32.totalorder %s28, 0
      %p49 = por %p47, %p48
      %p50 = scmp.ne.s32.totalorder %s36, %s37
      %p51 = scmp.eq.s32.totalorder %s29, 1
      %p52 = por %p50, %p51
      %p54 = scmp.ne.s32.totalorder %s37, %s53
      %p55 = scmp.eq.s32.totalorder %s29, 0
      %p56 = por %p54, %p55
      %s58 = sadd.s32 %s57, 1
      %p61 = scmp.eq.s32.totalorder %s23, 1
      %p62 = scmp.ne.s32.totalorder %s57, %s59
      %p63 = scmp.eq.s32.totalorder %s23, 0
      %p64 = por %p62, %p63
      %p65 = scmp.ne.s32.totalorder %s57, %s59
      %p66 = scmp.eq.s32.totalorder %s28, 1
      %p67 = por %p65, %p66
      %p68 = scmp.ne.s32.totalorder %s59, %s60
      %p69 = scmp.eq.s32.totalorder %s28, 0
      %p70 = por %p68, %p69
      %p71 = scmp.ne.s32.totalorder %s59, %s60
      %p72 = scmp.eq.s32.totalorder %s29, 1
      %p73 = por %p71, %p72
      %p75 = scmp.ne.s32.totalorder %s60, %s74
      %p76 = scmp.eq.s32.totalorder %s29, 0
      %p77 = por %p75, %p76
      %s79 = sadd.s32 %s78, 1
      %p82 = scmp.eq.s32.totalorder %s23, 1
      %p83 = scmp.ne.s32.totalorder %s78, %s80
      %p84 = scmp.eq.s32.totalorder %s23, 0
      %p85 = por %p83, %p84
      %p86 = scmp.ne.s32.totalorder %s78, %s80
      %p87 = scmp.eq.s32.totalorder %s28, 1
      %p88 = por %p86, %p87
      %p89 = scmp.ne.s32.totalorder %s80, %s81
      %p90 = scmp.eq.s32.totalorder %s28, 0
      %p91 = por %p89, %p90
      %p92 = scmp.ne.s32.totalorder %s80, %s81
      %p93 = scmp.eq.s32.totalorder %s29, 1
      %p94 = por %p92, %p93
      %p96 = scmp.ne.s32.totalorder %s81, %s95
      %p97 = scmp.eq.s32.totalorder %s29, 0
      %p98 = por %p96, %p97
      %s100 = sadd.s32 %s99, 1
      %p103 = scmp.eq.s32.totalorder %s23, 1
      %p104 = scmp.ne.s32.totalorder %s99, %s101
      %p105 = scmp.eq.s32.totalorder %s23, 0
      %p106 = por %p104, %p105
      %p107 = scmp.ne.s32.totalorder %s99, %s101
      %p108 = scmp.eq.s32.totalorder %s28, 1
      %p109 = por %p107, %p108
      %p110 = scmp.ne.s32.totalorder %s101, %s102
      %p111 = scmp.eq.s32.totalorder %s28, 0
      %p112 = por %p110, %p111
      %p113 = scmp.ne.s32.totalorder %s101, %s102
      %p114 = scmp.eq.s32.totalorder %s29, 1
      %p115 = por %p113, %p114
      %p117 = scmp.ne.s32.totalorder %s102, %s116
      %p118 = scmp.eq.s32.totalorder %s29, 0
      %p119 = por %p117, %p118
      %s121 = sadd.s32 %s120, 1
      %p124 = scmp.eq.s32.totalorder %s23, 1
      %p125 = scmp.ne.s32.totalorder %s120, %s122
      %p126 = scmp.eq.s32.totalorder %s23, 0
      %p127 = por %p125, %p126
      %p128 = scmp.ne.s32.totalorder %s120, %s122
      %p129 = scmp.eq.s32.totalorder %s28, 1
      %p130 = por %p128, %p129
      %p131 = scmp.ne.s32.totalorder %s122, %s123
      %p132 = scmp.eq.s32.totalorder %s28, 0
      %p133 = por %p131, %p132
      %p134 = scmp.ne.s32.totalorder %s122, %s123
      %p135 = scmp.eq.s32.totalorder %s29, 1
      %p136 = por %p134, %p135
      %p138 = scmp.ne.s32.totalorder %s123, %s137
      %p139 = scmp.eq.s32.totalorder %s29, 0
      %p140 = por %p138, %p139
      %s142 = sadd.s32 %s141, 1
      %p145 = scmp.eq.s32.totalorder %s23, 1
      %p146 = scmp.ne.s32.totalorder %s141, %s143
      %p147 = scmp.eq.s32.totalorder %s23, 0
      %p148 = por %p146, %p147
      %p149 = scmp.ne.s32.totalorder %s141, %s143
      %p150 = scmp.eq.s32.totalorder %s28, 1
      %p151 = por %p149, %p150
      %p152 = scmp.ne.s32.totalorder %s143, %s144
      %p153 = scmp.eq.s32.totalorder %s28, 0
      %p154 = por %p152, %p153
      %p155 = scmp.ne.s32.totalorder %s143, %s144
      %p156 = scmp.eq.s32.totalorder %s29, 1
      %p157 = por %p155, %p156
      %p159 = scmp.ne.s32.totalorder %s144, %s158
      %p160 = scmp.eq.s32.totalorder %s29, 0
      %p161 = por %p159, %p160
      %s163 = sadd.s32 %s162, 1
      %p166 = scmp.eq.s32.totalorder %s23, 1
      %p167 = scmp.ne.s32.totalorder %s162, %s164
      %p168 = scmp.eq.s32.totalorder %s23, 0
      %p169 = por %p167, %p168
      %p170 = scmp.ne.s32.totalorder %s162, %s164
      %p171 = scmp.eq.s32.totalorder %s28, 1
      %p172 = por %p170, %p171
      %p173 = scmp.ne.s32.totalorder %s164, %s165
      %p174 = scmp.eq.s32.totalorder %s28, 0
      %p175 = por %p173, %p174
      %p176 = scmp.ne.s32.totalorder %s164, %s165
      %p177 = scmp.eq.s32.totalorder %s29, 1
      %p178 = por %p176, %p177
      %p180 = scmp.ne.s32.totalorder %s165, %s179
      %p181 = scmp.eq.s32.totalorder %s29, 0
      %p182 = por %p180, %p181
      %s184 = sadd.s32 %s183, 1
      %p187 = scmp.eq.s32.totalorder %s23, 1
      %p188 = scmp.ne.s32.totalorder %s183, %s185
      %p189 = scmp.eq.s32.totalorder %s23, 0
      %p190 = por %p188, %p189
      %p191 = scmp.ne.s32.totalorder %s183, %s185
      %p192 = scmp.eq.s32.totalorder %s28, 1
      %p193 = por %p191, %p192
      %p194 = scmp.ne.s32.totalorder %s185, %s186
      %p195 = scmp.eq.s32.totalorder %s28, 0
      %p196 = por %p194, %p195
      %p197 = scmp.ne.s32.totalorder %s185, %s186
      %p198 = scmp.eq.s32.totalorder %s29, 1
      %p199 = por %p197, %p198
      %p201 = scmp.ne.s32.totalorder %s186, %s200
      %p202 = scmp.eq.s32.totalorder %s29, 0
      %p203 = por %p201, %p202
      %s205 = sadd.s32 %s204, 1
      %p208 = scmp.eq.s32.totalorder %s23, 1
      %p209 = scmp.ne.s32.totalorder %s204, %s206
      %p210 = scmp.eq.s32.totalorder %s23, 0
      %p211 = por %p209, %p210
      %p212 = scmp.ne.s32.totalorder %s204, %s206
      %p213 = scmp.eq.s32.totalorder %s28, 1
      %p214 = por %p212, %p213
      %p215 = scmp.ne.s32.totalorder %s206, %s207
      %p216 = scmp.eq.s32.totalorder %s28, 0
      %p217 = por %p215, %p216
      %p218 = scmp.ne.s32.totalorder %s206, %s207
      %p219 = scmp.eq.s32.totalorder %s29, 1
      %p220 = por %p218, %p219
      %p222 = scmp.ne.s32.totalorder %s207, %s221
      %p223 = scmp.eq.s32.totalorder %s29, 0
      %p224 = por %p222, %p223
      %s225 = ssub.s32 %s23, %s30
      %p226 = scmp.eq.s32.totalorder %s225, 0
      %s228 = sadd.s32 %s227, 1
      %s229 = scalar_select %p226, %s227, %s228
      %p232 = pneg %p226
      %p233 = scmp.eq.s32.totalorder %s23, 1
      %p234 = por %p232, %p233
      %p235 = scmp.ne.s32.totalorder %s227, %s230
      %p236 = scmp.eq.s32.totalorder %s23, 0
      %p237 = por %p235, %p236
      %p238 = scmp.ne.s32.totalorder %s227, %s230
      %p239 = scmp.eq.s32.totalorder %s28, 1
      %p240 = por %p238, %p239
      %p241 = scmp.ne.s32.totalorder %s230, %s231
      %p242 = scmp.eq.s32.totalorder %s28, 0
      %p243 = por %p241, %p242
      %p244 = scmp.ne.s32.totalorder %s230, %s231
      %p245 = scmp.eq.s32.totalorder %s29, 1
      %p246 = por %p244, %p245
      %p248 = scmp.ne.s32.totalorder %s231, %s247
      %p249 = scmp.eq.s32.totalorder %s29, 0
      %p250 = por %p248, %p249
      %p251 = scmp.le.s32.totalorder 1, %s23
      %p252 = scmp.lt.s32.totalorder %s23, 3
      %p253 = pnand %p251, %p252
      %p254 = pneg %p253
      // Predicated region
      $region9: #{tpu_custom_call.1} parent=5 // pred_check
        _
      $region10: #{tpu_custom_call.1} parent=5 // pred_check_branch
        %256 = sbr.rel (%p253) target = $region12
      $region11: #{tpu_custom_call.1} parent=5 // pred_region
        %s257 = ssub.s32 %s23, 1
        // Predicated region
        $region13: #{tpu_custom_call.1} parent=11 // pred_check
          %p258 = pneg %p70
        $region14: #{tpu_custom_call.1} parent=11 // pred_check_branch
          %260 = sbr.rel (%p258) target = $region16
        $region15: #{tpu_custom_call.1} parent=11 // pred_region
          %s262 = ssub.s32 1024, 1024
          %263 = vsyncadd [#allocation6], %s262
          %s264 = sshll.u32 [#allocation5], 4
          %s265 = int_to_ptr.vmem [resolvable:$true] %s264
          %270 = dma.hbm_to_vmem [thread:$0]  %s1, 1024, %s265, [#allocation6], 64, 64, 4
        $region16: #{tpu_custom_call.1} parent=11 // pred_fallthru
          _
        // Predicated region
        $region17: #{tpu_custom_call.1} parent=11 // pred_check
          %p271 = pneg %p91
        $region18: #{tpu_custom_call.1} parent=11 // pred_check_branch
          %273 = sbr.rel (%p271) target = $region20
        $region19: #{tpu_custom_call.1} parent=11 // pred_region
          _
        $region20: #{tpu_custom_call.1} parent=11 // pred_fallthru
          _
        // Predicated region
        $region21: #{tpu_custom_call.1} parent=11 // pred_check
          %p274 = pneg %p112
        $region22: #{tpu_custom_call.1} parent=11 // pred_check_branch
          %276 = sbr.rel (%p274) target = $region24
        $region23: #{tpu_custom_call.1} parent=11 // pred_region
          %s278 = ssub.s32 1024, 1024
          %279 = vsyncadd [#allocation6], %s278
          %s280 = sshll.u32 [#allocation7], 4
          %s281 = int_to_ptr.vmem [resolvable:$true] %s280
          %286 = dma.hbm_to_vmem [thread:$0]  %s3, 1024, %s281, [#allocation6], 64, 64, 4
        $region24: #{tpu_custom_call.1} parent=11 // pred_fallthru
          _
        // Predicated region
        $region25: #{tpu_custom_call.1} parent=11 // pred_check
          %p287 = pneg %p133
        $region26: #{tpu_custom_call.1} parent=11 // pred_check_branch
          %289 = sbr.rel (%p287) target = $region28
        $region27: #{tpu_custom_call.1} parent=11 // pred_region
          _
        $region28: #{tpu_custom_call.1} parent=11 // pred_fallthru
          _
        // Predicated region
        $region29: #{tpu_custom_call.1} parent=11 // pred_check
          %p290 = pneg %p154
        $region30: #{tpu_custom_call.1} parent=11 // pred_check_branch
          %292 = sbr.rel (%p290) target = $region32
        $region31: #{tpu_custom_call.1} parent=11 // pred_region
          %s294 = ssub.s32 1024, 1024
          %295 = vsyncadd [#allocation9], %s294
          %s296 = sshll.u32 [#allocation8], 4
          %s297 = int_to_ptr.vmem [resolvable:$true] %s296
          %302 = dma.hbm_to_vmem [thread:$0]  %s5, 1024, %s297, [#allocation9], 64, 64, 4
        $region32: #{tpu_custom_call.1} parent=11 // pred_fallthru
          _
        // Predicated region
        $region33: #{tpu_custom_call.1} parent=11 // pred_check
          %p303 = pneg %p175
        $region34: #{tpu_custom_call.1} parent=11 // pred_check_branch
          %305 = sbr.rel (%p303) target = $region36
        $region35: #{tpu_custom_call.1} parent=11 // pred_region
          _
        $region36: #{tpu_custom_call.1} parent=11 // pred_fallthru
          _
        // Predicated region
        $region37: #{tpu_custom_call.1} parent=11 // pred_check
          %p306 = pneg %p196
        $region38: #{tpu_custom_call.1} parent=11 // pred_check_branch
          %308 = sbr.rel (%p306) target = $region40
        $region39: #{tpu_custom_call.1} parent=11 // pred_region
          %s310 = ssub.s32 1024, 1024
          %311 = vsyncadd [#allocation9], %s310
          %s312 = sshll.u32 [#allocation10], 4
          %s313 = int_to_ptr.vmem [resolvable:$true] %s312
          %318 = dma.hbm_to_vmem [thread:$0]  %s7, 1024, %s313, [#allocation9], 64, 64, 4
        $region40: #{tpu_custom_call.1} parent=11 // pred_fallthru
          _
        // Predicated region
        $region41: #{tpu_custom_call.1} parent=11 // pred_check
          %p319 = pneg %p217
        $region42: #{tpu_custom_call.1} parent=11 // pred_check_branch
          %321 = sbr.rel (%p319) target = $region44
        $region43: #{tpu_custom_call.1} parent=11 // pred_region
          _
        $region44: #{tpu_custom_call.1} parent=11 // pred_fallthru
          _
      $region12: #{tpu_custom_call.1} parent=5 // pred_fallthru
        _
      %p322 = scmp.lt.s32.totalorder %s23, 2
      // Predicated region
      $region45: #{tpu_custom_call.1} parent=5 // pred_check
        %p323 = pneg %p322
      $region46: #{tpu_custom_call.1} parent=5 // pred_check_branch
        %325 = sbr.rel (%p323) target = $region48
      $region47: #{tpu_custom_call.1} parent=5 // pred_region
        // Predicated region
        $region49: #{tpu_custom_call.1} parent=47 // pred_check
          %p326 = pneg %p43
        $region50: #{tpu_custom_call.1} parent=47 // pred_check_branch
          %328 = sbr.rel (%p326) target = $region52
        $region51: #{tpu_custom_call.1} parent=47 // pred_region
          %s329 = sand.u32 %s33, 1
          %s330 = scalar_lea.sflag [#allocation3], %s329
          %s331 = sand.u32 %s33, 1
          %s332 = smul.addr %s331, 56
          %s333 = scalar_lea.vmem [#allocation2], %s332
          %s334 = smul.u32 14, %s23
          %s336 = ssub.s32 896, 896
          %337 = vsyncadd %s330, %s336
          %s338 = smul.addr %s334, 64
          %s339 = scalar_lea.hbm %s0, %s338
          %s340 = sshll.u32 %s333, 4
          %s341 = int_to_ptr.vmem [resolvable:$true] %s340
          %346 = dma.hbm_to_vmem [thread:$0]  %s339, 896, %s341, %s330, 64, 64, 4
        $region52: #{tpu_custom_call.1} parent=47 // pred_fallthru
          _
      $region48: #{tpu_custom_call.1} parent=5 // pred_fallthru
        _
      %p347 = scmp.le.s32.totalorder 1, %s23
      %p348 = scmp.lt.s32.totalorder %s23, 3
      %p349 = pnand %p347, %p348
      %p350 = pneg %p349
      // Predicated region
      $region53: #{tpu_custom_call.1} parent=5 // pred_check
        _
      $region54: #{tpu_custom_call.1} parent=5 // pred_check_branch
        %352 = sbr.rel (%p349) target = $region56
      $region55: #{tpu_custom_call.1} parent=5 // pred_region
        %s353 = ssub.s32 %s23, 1
        %s354 = sand.u32 %s36, 1
        %s355 = scalar_lea.sflag [#allocation3], %s354
        %s356 = sand.u32 %s36, 1
        %s357 = smul.addr %s356, 56
        %s358 = scalar_lea.vmem [#allocation2], %s357
        // Predicated region
        $region57: #{tpu_custom_call.1} parent=55 // pred_check
          %p359 = pneg %p49
        $region58: #{tpu_custom_call.1} parent=55 // pred_check_branch
          %361 = sbr.rel (%p359) target = $region60
        $region59: #{tpu_custom_call.1} parent=55 // pred_region
          %362 = dma.done %s355, 896
        $region60: #{tpu_custom_call.1} parent=55 // pred_fallthru
          _
        // Predicated region
        $region61: #{tpu_custom_call.1} parent=55 // pred_check
          %p363 = pneg %p70
        $region62: #{tpu_custom_call.1} parent=55 // pred_check_branch
          %365 = sbr.rel (%p363) target = $region64
        $region63: #{tpu_custom_call.1} parent=55 // pred_region
          %366 = dma.done [#allocation6], 1024
        $region64: #{tpu_custom_call.1} parent=55 // pred_fallthru
          _
        // Predicated region
        $region65: #{tpu_custom_call.1} parent=55 // pred_check
          %p367 = pneg %p112
        $region66: #{tpu_custom_call.1} parent=55 // pred_check_branch
          %369 = sbr.rel (%p367) target = $region68
        $region67: #{tpu_custom_call.1} parent=55 // pred_region
          %370 = dma.done [#allocation6], 1024
        $region68: #{tpu_custom_call.1} parent=55 // pred_fallthru
          _
        // Predicated region
        $region69: #{tpu_custom_call.1} parent=55 // pred_check
          %p371 = pneg %p154
        $region70: #{tpu_custom_call.1} parent=55 // pred_check_branch
          %373 = sbr.rel (%p371) target = $region72
        $region71: #{tpu_custom_call.1} parent=55 // pred_region
          %374 = dma.done [#allocation9], 1024
        $region72: #{tpu_custom_call.1} parent=55 // pred_fallthru
          _
        // Predicated region
        $region73: #{tpu_custom_call.1} parent=55 // pred_check
          %p375 = pneg %p196
        $region74: #{tpu_custom_call.1} parent=55 // pred_check_branch
          %377 = sbr.rel (%p375) target = $region76
        $region75: #{tpu_custom_call.1} parent=55 // pred_region
          %378 = dma.done [#allocation9], 1024
        $region76: #{tpu_custom_call.1} parent=55 // pred_fallthru
          _
        %s379 = sand.u32 %s36, 1
        %s380 = scalar_lea.sflag [#allocation3], %s379
        %s381 = sand.u32 %s36, 1
        %s382 = smul.addr %s381, 56
        %s383 = scalar_lea.vmem [#allocation2], %s382
        %p384 = pneg %p49
        %p385 = pneg %p46
        %p386 = pneg %p70
        %p387 = pneg %p67
        %p388 = pneg %p91
        %p389 = pneg %p88
        %p390 = pneg %p112
        %p391 = pneg %p109
        %p392 = pneg %p133
        %p393 = pneg %p130
        %p394 = pneg %p154
        %p395 = pneg %p151
        %p396 = pneg %p175
        %p397 = pneg %p172
        %p398 = pneg %p196
        %p399 = pneg %p193
        %p400 = pneg %p217
        %p401 = pneg %p214
        %p402 = pneg %p243
        %p403 = pneg %p240
        %s404 = sand.u32 %s230, 1
        %s405 = scalar_lea.sflag [#allocation4], %s404
        %s406 = sand.u32 %s230, 1
        %s407 = smul.addr %s406, 112
        %s408 = scalar_lea.vmem [#allocation11], %s407
        %s409 = smul.u32 14, %s28
        %s410 = smul.u32 14, %s28
        %v412 = vld [vmem:[%s358] sm:$0xf]
        %v413 = vld [vmem:[%s358 + $0x4] sm:$0xf]
        %v414 = vld [vmem:[%s358 + $0x8] sm:$0xf]
        %v415 = vld [vmem:[%s358 + $0xc] sm:$0xf]
        %v416 = vld [vmem:[%s358 + $0x10] sm:$0xf]
        %v417 = vld [vmem:[%s358 + $0x14] sm:$0xf]
        %v418 = vld [vmem:[%s358 + $0x18] sm:$0xf]
        %v419 = vld [vmem:[%s358 + $0x1c] sm:$0xf]
        %v420 = vld [vmem:[%s358 + $0x20] sm:$0xf]
        %v421 = vld [vmem:[%s358 + $0x24] sm:$0xf]
        %v422 = vld [vmem:[%s358 + $0x28] sm:$0xf]
        %v423 = vld [vmem:[%s358 + $0x2c] sm:$0xf]
        %v424 = vld [vmem:[%s358 + $0x30] sm:$0xf]
        %v425 = vld [vmem:[%s358 + $0x34] sm:$0xf]
        %v426 = vld [vmem:[#allocation5] sm:$0xf]
        %v427 = vld [vmem:[#allocation5 + $0x4] sm:$0xf]
        %v428 = vld [vmem:[#allocation5 + $0x8] sm:$0xf]
        %v429 = vld [vmem:[#allocation5 + $0xc] sm:$0xf]
        %v430 = vld [vmem:[#allocation5 + $0x10] sm:$0xf]
        %v431 = vld [vmem:[#allocation5 + $0x14] sm:$0xf]
        %v432 = vld [vmem:[#allocation5 + $0x18] sm:$0xf]
        %v433 = vld [vmem:[#allocation5 + $0x1c] sm:$0xf]
        %v434 = vld [vmem:[#allocation5 + $0x20] sm:$0xf]
        %v435 = vld [vmem:[#allocation5 + $0x24] sm:$0xf]
        %v436 = vld [vmem:[#allocation5 + $0x28] sm:$0xf]
        %v437 = vld [vmem:[#allocation5 + $0x2c] sm:$0xf]
        %v438 = vld [vmem:[#allocation5 + $0x30] sm:$0xf]
        %v439 = vld [vmem:[#allocation5 + $0x34] sm:$0xf]
        %v440 = vld [vmem:[#allocation5 + $0x38] sm:$0xf]
        %v441 = vld [vmem:[#allocation5 + $0x3c] sm:$0xf]
        %v442 = vld [vmem:[%s2] sm:$0x1]
        %v444 = vlaneseq
        %v445 = vshrl.u32 %v444, 7
        %v446 = vsub.s32 0, %v445
        %v447 = vrot.slane %v442, %v446
        %v463 = vunpack.c.l.b16 %v412
        %v464 = vunpack.c.l.b16 %v413
        %v465 = vunpack.c.l.b16 %v414
        %v466 = vunpack.c.l.b16 %v415
        %v467 = vunpack.c.l.b16 %v416
        %v468 = vunpack.c.l.b16 %v417
        %v469 = vunpack.c.l.b16 %v418
        %v470 = vunpack.c.l.b16 %v419
        %v471 = vunpack.c.l.b16 %v420
        %v472 = vunpack.c.l.b16 %v421
        %v473 = vunpack.c.l.b16 %v422
        %v474 = vunpack.c.l.b16 %v423
        %v475 = vunpack.c.l.b16 %v424
        %v476 = vunpack.c.l.b16 %v425
        %v477 = vpack.c.b16 %v464, %v463
        %v478 = vpack.c.b16 %v466, %v465
        %v479 = vpack.c.b16 %v468, %v467
        %v480 = vpack.c.b16 %v470, %v469
        %v481 = vpack.c.b16 %v472, %v471
        %v482 = vpack.c.b16 %v474, %v473
        %v483 = vpack.c.b16 %v476, %v475
        %v507 = vunpack.c.l.b16 %v426
        %v508 = vunpack.c.l.b16 %v427
        %v509 = vunpack.c.l.b16 %v428
        %v510 = vunpack.c.l.b16 %v429
        %v511 = vunpack.c.l.b16 %v430
        %v512 = vunpack.c.l.b16 %v431
        %v513 = vunpack.c.l.b16 %v432
        %v514 = vunpack.c.l.b16 %v433
        %v515 = vunpack.c.l.b16 %v434
        %v516 = vunpack.c.l.b16 %v435
        %v517 = vunpack.c.l.b16 %v436
        %v518 = vunpack.c.l.b16 %v437
        %v519 = vunpack.c.l.b16 %v438
        %v520 = vunpack.c.l.b16 %v439
        %v521 = vunpack.c.l.b16 %v440
        %v522 = vunpack.c.l.b16 %v441
        %v523 = vpack.c.b16 %v508, %v507
        %v524 = vpack.c.b16 %v510, %v509
        %v525 = vpack.c.b16 %v512, %v511
        %v526 = vpack.c.b16 %v514, %v513
        %v527 = vpack.c.b16 %v516, %v515
        %v528 = vpack.c.b16 %v518, %v517
        %v529 = vpack.c.b16 %v520, %v519
        %v530 = vpack.c.b16 %v522, %v521
        %539 = vmatprep.subr.bf16.mxu0 0
        %540 = vmatpush1.bf16.msra.mxu0 %v523
        %541 = vmatprep.subr.bf16.mxu0 0
        %542 = vmatpush1.bf16.msra.mxu0 %v524
        %543 = vmatprep.subr.bf16.mxu0 0
        %544 = vmatpush1.bf16.msra.mxu0 %v525
        %545 = vmatprep.subr.bf16.mxu0 0
        %546 = vmatpush1.bf16.msra.mxu0 %v526
        %547 = vmatprep.subr.bf16.mxu0 0
        %548 = vmatpush1.bf16.msra.mxu0 %v527
        %549 = vmatprep.subr.bf16.mxu0 0
        %550 = vmatpush1.bf16.msra.mxu0 %v528
        %551 = vmatprep.subr.bf16.mxu0 0
        %552 = vmatpush1.bf16.msra.mxu0 %v529
        %553 = vmatprep.subr.bf16.mxu0 0
        %554 = vmatpush1.bf16.msra.mxu0 %v530
        %555 = vmatprep.subr.bf16.mxu0 0
        %556 = vmatpush1.bf16.msra.mxu0 0
        %557 = vmatprep.subr.bf16.mxu0 0
        %558 = vmatpush1.bf16.msra.mxu0 0
        %559 = vmatprep.subr.bf16.mxu0 0
        %560 = vmatpush1.bf16.msra.mxu0 0
        %561 = vmatprep.subr.bf16.mxu0 0
        %562 = vmatpush1.bf16.msra.mxu0 0
        %563 = vmatprep.subr.bf16.mxu0 0
        %564 = vmatpush1.bf16.msra.mxu0 0
        %565 = vmatprep.subr.bf16.mxu0 0
        %566 = vmatpush1.bf16.msra.mxu0 0
        %567 = vmatprep.subr.bf16.mxu0 0
        %568 = vmatpush1.bf16.msra.mxu0 0
        %569 = vmatprep.subr.bf16.mxu0 0
        %570 = vmatpush1.bf16.msra.mxu0 0
        %571 = vmatprep.mubr.bf16.mxu0 0
        %572 = vmatmul.mubr.bf16.gmra.mrb[0].mxu0 %v477
        %v573 = vpop.f32.mrb[0].mxu0
        %v574 = vadd.f32 %v447, %v573
        %v575 = vpop.f32.mrb[0].mxu0
        %v576 = vpop.f32.mrb[0].mxu0
        %v577 = vadd.f32 %v447, %v576
        %v578 = vpop.f32.mrb[0].mxu0
        %579 = vmatprep.mubr.bf16.mxu0 0
        %580 = vmatmul.mubr.bf16.gmra.mrb[0].mxu0 %v478
        %v581 = vpop.f32.mrb[0].mxu0
        %v582 = vadd.f32 %v447, %v581
        %v583 = vpop.f32.mrb[0].mxu0
        %v584 = vpop.f32.mrb[0].mxu0
        %v585 = vadd.f32 %v447, %v584
        %v586 = vpop.f32.mrb[0].mxu0
        %587 = vmatprep.mubr.bf16.mxu0 0
        %588 = vmatmul.mubr.bf16.gmra.mrb[0].mxu0 %v479
        %v589 = vpop.f32.mrb[0].mxu0
        %v590 = vadd.f32 %v447, %v589
        %v591 = vpop.f32.mrb[0].mxu0
        %v592 = vpop.f32.mrb[0].mxu0
        %v593 = vadd.f32 %v447, %v592
        %v594 = vpop.f32.mrb[0].mxu0
        %595 = vmatprep.mubr.bf16.mxu0 0
        %596 = vmatmul.mubr.bf16.gmra.mrb[0].mxu0 %v480
        %v597 = vpop.f32.mrb[0].mxu0
        %v598 = vadd.f32 %v447, %v597
        %v599 = vpop.f32.mrb[0].mxu0
        %v600 = vpop.f32.mrb[0].mxu0
        %v601 = vadd.f32 %v447, %v600
        %v602 = vpop.f32.mrb[0].mxu0
        %603 = vmatprep.mubr.bf16.mxu0 0
        %604 = vmatmul.mubr.bf16.gmra.mrb[0].mxu0 %v481
        %v605 = vpop.f32.mrb[0].mxu0
        %v606 = vadd.f32 %v447, %v605
        %v607 = vpop.f32.mrb[0].mxu0
        %v608 = vpop.f32.mrb[0].mxu0
        %v609 = vadd.f32 %v447, %v608
        %v610 = vpop.f32.mrb[0].mxu0
        %611 = vmatprep.mubr.bf16.mxu0 0
        %612 = vmatmul.mubr.bf16.gmra.mrb[0].mxu0 %v482
        %v613 = vpop.f32.mrb[0].mxu0
        %v614 = vadd.f32 %v447, %v613
        %v615 = vpop.f32.mrb[0].mxu0
        %v616 = vpop.f32.mrb[0].mxu0
        %v617 = vadd.f32 %v447, %v616
        %v618 = vpop.f32.mrb[0].mxu0
        %619 = vmatprep.mubr.bf16.mxu0 0
        %620 = vmatmul.mubr.bf16.gmra.mrb[0].mxu0 %v483
        %v621 = vpop.f32.mrb[0].mxu0
        %v622 = vadd.f32 %v447, %v621
        %v623 = vpop.f32.mrb[0].mxu0
        %v624 = vpop.f32.mrb[0].mxu0
        %v625 = vadd.f32 %v447, %v624
        %v626 = vpop.f32.mrb[0].mxu0
        %627 = vdwg.mxu0
        %v628 = vsub.f32 0.0, %v574
        %v629 = vsub.f32 0.0, %v577
        %v630 = vsub.f32 0.0, %v582
        %v631 = vsub.f32 0.0, %v585
        %v632 = vsub.f32 0.0, %v590
        %v633 = vsub.f32 0.0, %v593
        %v634 = vsub.f32 0.0, %v598
        %v635 = vsub.f32 0.0, %v601
        %v636 = vsub.f32 0.0, %v606
        %v637 = vsub.f32 0.0, %v609
        %v638 = vsub.f32 0.0, %v614
        %v639 = vsub.f32 0.0, %v617
        %v640 = vsub.f32 0.0, %v622
        %v641 = vsub.f32 0.0, %v625
        %v642 = vmul.f32 %v628, 1.442695
        %v643 = vpow.pop %v642
        %v644 = vmul.f32 %v629, 1.442695
        %v645 = vpow.pop %v644
        %v646 = vmul.f32 %v630, 1.442695
        %v647 = vpow.pop %v646
        %v648 = vmul.f32 %v631, 1.442695
        %v649 = vpow.pop %v648
        %v650 = vmul.f32 %v632, 1.442695
        %v651 = vpow.pop %v650
        %v652 = vmul.f32 %v633, 1.442695
        %v653 = vpow.pop %v652
        %v654 = vmul.f32 %v634, 1.442695
        %v655 = vpow.pop %v654
        %v656 = vmul.f32 %v635, 1.442695
        %v657 = vpow.pop %v656
        %v658 = vmul.f32 %v636, 1.442695
        %v659 = vpow.pop %v658
        %v660 = vmul.f32 %v637, 1.442695
        %v661 = vpow.pop %v660
        %v662 = vmul.f32 %v638, 1.442695
        %v663 = vpow.pop %v662
        %v664 = vmul.f32 %v639, 1.442695
        %v665 = vpow.pop %v664
        %v666 = vmul.f32 %v640, 1.442695
        %v667 = vpow.pop %v666
        %v668 = vmul.f32 %v641, 1.442695
        %v669 = vpow.pop %v668
        %v670 = vadd.f32 %v643, 1.0
        %v671 = vadd.f32 %v645, 1.0
        %v672 = vadd.f32 %v647, 1.0
        %v673 = vadd.f32 %v649, 1.0
        %v674 = vadd.f32 %v651, 1.0
        %v675 = vadd.f32 %v653, 1.0
        %v676 = vadd.f32 %v655, 1.0
        %v677 = vadd.f32 %v657, 1.0
        %v678 = vadd.f32 %v659, 1.0
        %v679 = vadd.f32 %v661, 1.0
        %v680 = vadd.f32 %v663, 1.0
        %v681 = vadd.f32 %v665, 1.0
        %v682 = vadd.f32 %v667, 1.0
        %v683 = vadd.f32 %v669, 1.0
        %v684 = vrcp.pop %v670
        %v685 = vrcp.pop %v671
        %v686 = vrcp.pop %v672
        %v687 = vrcp.pop %v673
        %v688 = vrcp.pop %v674
        %v689 = vrcp.pop %v675
        %v690 = vrcp.pop %v676
        %v691 = vrcp.pop %v677
        %v692 = vrcp.pop %v678
        %v693 = vrcp.pop %v679
        %v694 = vrcp.pop %v680
        %v695 = vrcp.pop %v681
        %v696 = vrcp.pop %v682
        %v697 = vrcp.pop %v683
        %v698 = vpack.c.bf16 %v685, %v684
        %v699 = vpack.c.bf16 %v687, %v686
        %v700 = vpack.c.bf16 %v689, %v688
        %v701 = vpack.c.bf16 %v691, %v690
        %v702 = vpack.c.bf16 %v693, %v692
        %v703 = vpack.c.bf16 %v695, %v694
        %v704 = vpack.c.bf16 %v697, %v696
        %v705 = vld [vmem:[#allocation7] sm:$0xf]
        %v706 = vld [vmem:[#allocation7 + $0x4] sm:$0xf]
        %v707 = vld [vmem:[#allocation7 + $0x8] sm:$0xf]
        %v708 = vld [vmem:[#allocation7 + $0xc] sm:$0xf]
        %v709 = vld [vmem:[#allocation7 + $0x10] sm:$0xf]
        %v710 = vld [vmem:[#allocation7 + $0x14] sm:$0xf]
        %v711 = vld [vmem:[#allocation7 + $0x18] sm:$0xf]
        %v712 = vld [vmem:[#allocation7 + $0x1c] sm:$0xf]
        %v713 = vld [vmem:[#allocation7 + $0x20] sm:$0xf]
        %v714 = vld [vmem:[#allocation7 + $0x24] sm:$0xf]
        %v715 = vld [vmem:[#allocation7 + $0x28] sm:$0xf]
        %v716 = vld [vmem:[#allocation7 + $0x2c] sm:$0xf]
        %v717 = vld [vmem:[#allocation7 + $0x30] sm:$0xf]
        %v718 = vld [vmem:[#allocation7 + $0x34] sm:$0xf]
        %v719 = vld [vmem:[#allocation7 + $0x38] sm:$0xf]
        %v720 = vld [vmem:[#allocation7 + $0x3c] sm:$0xf]
        %v721 = vld [vmem:[%s4] sm:$0x1]
        %v723 = vlaneseq
        %v724 = vshrl.u32 %v723, 7
        %v725 = vsub.s32 0, %v724
        %v726 = vrot.slane %v721, %v725
        %v744 = vunpack.c.l.b16 %v705
        %v745 = vunpack.c.l.b16 %v706
        %v746 = vunpack.c.l.b16 %v707
        %v747 = vunpack.c.l.b16 %v708
        %v748 = vunpack.c.l.b16 %v709
        %v749 = vunpack.c.l.b16 %v710
        %v750 = vunpack.c.l.b16 %v711
        %v751 = vunpack.c.l.b16 %v712
        %v752 = vunpack.c.l.b16 %v713
        %v753 = vunpack.c.l.b16 %v714
        %v754 = vunpack.c.l.b16 %v715
        %v755 = vunpack.c.l.b16 %v716
        %v756 = vunpack.c.l.b16 %v717
        %v757 = vunpack.c.l.b16 %v718
        %v758 = vunpack.c.l.b16 %v719
        %v759 = vunpack.c.l.b16 %v720
        %v760 = vpack.c.b16 %v745, %v744
        %v761 = vpack.c.b16 %v747, %v746
        %v762 = vpack.c.b16 %v749, %v748
        %v763 = vpack.c.b16 %v751, %v750
        %v764 = vpack.c.b16 %v753, %v752
        %v765 = vpack.c.b16 %v755, %v754
        %v766 = vpack.c.b16 %v757, %v756
        %v767 = vpack.c.b16 %v759, %v758
        %776 = vmatprep.subr.bf16.mxu0 0
        %777 = vmatpush1.bf16.msra.mxu0 %v760
        %778 = vmatprep.subr.bf16.mxu0 0
        %779 = vmatpush1.bf16.msra.mxu0 %v761
        %780 = vmatprep.subr.bf16.mxu0 0
        %781 = vmatpush1.bf16.msra.mxu0 %v762
        %782 = vmatprep.subr.bf16.mxu0 0
        %783 = vmatpush1.bf16.msra.mxu0 %v763
        %784 = vmatprep.subr.bf16.mxu0 0
        %785 = vmatpush1.bf16.msra.mxu0 %v764
        %786 = vmatprep.subr.bf16.mxu0 0
        %787 = vmatpush1.bf16.msra.mxu0 %v765
        %788 = vmatprep.subr.bf16.mxu0 0
        %789 = vmatpush1.bf16.msra.mxu0 %v766
        %790 = vmatprep.subr.bf16.mxu0 0
        %791 = vmatpush1.bf16.msra.mxu0 %v767
        %792 = vmatprep.subr.bf16.mxu0 0
        %793 = vmatpush1.bf16.msra.mxu0 0
        %794 = vmatprep.subr.bf16.mxu0 0
        %795 = vmatpush1.bf16.msra.mxu0 0
        %796 = vmatprep.subr.bf16.mxu0 0
        %797 = vmatpush1.bf16.msra.mxu0 0
        %798 = vmatprep.subr.bf16.mxu0 0
        %799 = vmatpush1.bf16.msra.mxu0 0
        %800 = vmatprep.subr.bf16.mxu0 0
        %801 = vmatpush1.bf16.msra.mxu0 0
        %802 = vmatprep.subr.bf16.mxu0 0
        %803 = vmatpush1.bf16.msra.mxu0 0
        %804 = vmatprep.subr.bf16.mxu0 0
        %805 = vmatpush1.bf16.msra.mxu0 0
        %806 = vmatprep.subr.bf16.mxu0 0
        %807 = vmatpush1.bf16.msra.mxu0 0
        %808 = vmatprep.mubr.bf16.mxu0 0
        %809 = vmatmul.mubr.bf16.gmra.mrb[0].mxu0 %v698
        %v810 = vpop.f32.mrb[0].mxu0
        %v811 = vadd.f32 %v726, %v810
        %v812 = vpop.f32.mrb[0].mxu0
        %v813 = vpop.f32.mrb[0].mxu0
        %v814 = vadd.f32 %v726, %v813
        %v815 = vpop.f32.mrb[0].mxu0
        %816 = vmatprep.mubr.bf16.mxu0 0
        %817 = vmatmul.mubr.bf16.gmra.mrb[0].mxu0 %v699
        %v818 = vpop.f32.mrb[0].mxu0
        %v819 = vadd.f32 %v726, %v818
        %v820 = vpop.f32.mrb[0].mxu0
        %v821 = vpop.f32.mrb[0].mxu0
        %v822 = vadd.f32 %v726, %v821
        %v823 = vpop.f32.mrb[0].mxu0
        %824 = vmatprep.mubr.bf16.mxu0 0
        %825 = vmatmul.mubr.bf16.gmra.mrb[0].mxu0 %v700
        %v826 = vpop.f32.mrb[0].mxu0
        %v827 = vadd.f32 %v726, %v826
        %v828 = vpop.f32.mrb[0].mxu0
        %v829 = vpop.f32.mrb[0].mxu0
        %v830 = vadd.f32 %v726, %v829
        %v831 = vpop.f32.mrb[0].mxu0
        %832 = vmatprep.mubr.bf16.mxu0 0
        %833 = vmatmul.mubr.bf16.gmra.mrb[0].mxu0 %v701
        %v834 = vpop.f32.mrb[0].mxu0
        %v835 = vadd.f32 %v726, %v834
        %v836 = vpop.f32.mrb[0].mxu0
        %v837 = vpop.f32.mrb[0].mxu0
        %v838 = vadd.f32 %v726, %v837
        %v839 = vpop.f32.mrb[0].mxu0
        %840 = vmatprep.mubr.bf16.mxu0 0
        %841 = vmatmul.mubr.bf16.gmra.mrb[0].mxu0 %v702
        %v842 = vpop.f32.mrb[0].mxu0
        %v843 = vadd.f32 %v726, %v842
        %v844 = vpop.f32.mrb[0].mxu0
        %v845 = vpop.f32.mrb[0].mxu0
        %v846 = vadd.f32 %v726, %v845
        %v847 = vpop.f32.mrb[0].mxu0
        %848 = vmatprep.mubr.bf16.mxu0 0
        %849 = vmatmul.mubr.bf16.gmra.mrb[0].mxu0 %v703
        %v850 = vpop.f32.mrb[0].mxu0
        %v851 = vadd.f32 %v726, %v850
        %v852 = vpop.f32.mrb[0].mxu0
        %v853 = vpop.f32.mrb[0].mxu0
        %v854 = vadd.f32 %v726, %v853
        %v855 = vpop.f32.mrb[0].mxu0
        %856 = vmatprep.mubr.bf16.mxu0 0
        %857 = vmatmul.mubr.bf16.gmra.mrb[0].mxu0 %v704
        %v858 = vpop.f32.mrb[0].mxu0
        %v859 = vadd.f32 %v726, %v858
        %v860 = vpop.f32.mrb[0].mxu0
        %v861 = vpop.f32.mrb[0].mxu0
        %v862 = vadd.f32 %v726, %v861
        %v863 = vpop.f32.mrb[0].mxu0
        %864 = vdwg.mxu0
        %v865 = vsub.f32 0.0, %v811
        %v866 = vsub.f32 0.0, %v814
        %v867 = vsub.f32 0.0, %v819
        %v868 = vsub.f32 0.0, %v822
        %v869 = vsub.f32 0.0, %v827
        %v870 = vsub.f32 0.0, %v830
        %v871 = vsub.f32 0.0, %v835
        %v872 = vsub.f32 0.0, %v838
        %v873 = vsub.f32 0.0, %v843
        %v874 = vsub.f32 0.0, %v846
        %v875 = vsub.f32 0.0, %v851
        %v876 = vsub.f32 0.0, %v854
        %v877 = vsub.f32 0.0, %v859
        %v878 = vsub.f32 0.0, %v862
        %v879 = vmul.f32 %v865, 1.442695
        %v880 = vpow.pop %v879
        %v881 = vmul.f32 %v866, 1.442695
        %v882 = vpow.pop %v881
        %v883 = vmul.f32 %v867, 1.442695
        %v884 = vpow.pop %v883
        %v885 = vmul.f32 %v868, 1.442695
        %v886 = vpow.pop %v885
        %v887 = vmul.f32 %v869, 1.442695
        %v888 = vpow.pop %v887
        %v889 = vmul.f32 %v870, 1.442695
        %v890 = vpow.pop %v889
        %v891 = vmul.f32 %v871, 1.442695
        %v892 = vpow.pop %v891
        %v893 = vmul.f32 %v872, 1.442695
        %v894 = vpow.pop %v893
        %v895 = vmul.f32 %v873, 1.442695
        %v896 = vpow.pop %v895
        %v897 = vmul.f32 %v874, 1.442695
        %v898 = vpow.pop %v897
        %v899 = vmul.f32 %v875, 1.442695
        %v900 = vpow.pop %v899
        %v901 = vmul.f32 %v876, 1.442695
        %v902 = vpow.pop %v901
        %v903 = vmul.f32 %v877, 1.442695
        %v904 = vpow.pop %v903
        %v905 = vmul.f32 %v878, 1.442695
        %v906 = vpow.pop %v905
        %v907 = vadd.f32 %v880, 1.0
        %v908 = vadd.f32 %v882, 1.0
        %v909 = vadd.f32 %v884, 1.0
        %v910 = vadd.f32 %v886, 1.0
        %v911 = vadd.f32 %v888, 1.0
        %v912 = vadd.f32 %v890, 1.0
        %v913 = vadd.f32 %v892, 1.0
        %v914 = vadd.f32 %v894, 1.0
        %v915 = vadd.f32 %v896, 1.0
        %v916 = vadd.f32 %v898, 1.0
        %v917 = vadd.f32 %v900, 1.0
        %v918 = vadd.f32 %v902, 1.0
        %v919 = vadd.f32 %v904, 1.0
        %v920 = vadd.f32 %v906, 1.0
        %v921 = vrcp.pop %v907
        %v922 = vrcp.pop %v908
        %v923 = vrcp.pop %v909
        %v924 = vrcp.pop %v910
        %v925 = vrcp.pop %v911
        %v926 = vrcp.pop %v912
        %v927 = vrcp.pop %v913
        %v928 = vrcp.pop %v914
        %v929 = vrcp.pop %v915
        %v930 = vrcp.pop %v916
        %v931 = vrcp.pop %v917
        %v932 = vrcp.pop %v918
        %v933 = vrcp.pop %v919
        %v934 = vrcp.pop %v920
        %v935 = vpack.c.bf16 %v922, %v921
        %v936 = vpack.c.bf16 %v924, %v923
        %v937 = vpack.c.bf16 %v926, %v925
        %v938 = vpack.c.bf16 %v928, %v927
        %v939 = vpack.c.bf16 %v930, %v929
        %v940 = vpack.c.bf16 %v932, %v931
        %v941 = vpack.c.bf16 %v934, %v933
        %v942 = vld [vmem:[#allocation8] sm:$0xf]
        %v943 = vld [vmem:[#allocation8 + $0x4] sm:$0xf]
        %v944 = vld [vmem:[#allocation8 + $0x8] sm:$0xf]
        %v945 = vld [vmem:[#allocation8 + $0xc] sm:$0xf]
        %v946 = vld [vmem:[#allocation8 + $0x10] sm:$0xf]
        %v947 = vld [vmem:[#allocation8 + $0x14] sm:$0xf]
        %v948 = vld [vmem:[#allocation8 + $0x18] sm:$0xf]
        %v949 = vld [vmem:[#allocation8 + $0x1c] sm:$0xf]
        %v950 = vld [vmem:[#allocation8 + $0x20] sm:$0xf]
        %v951 = vld [vmem:[#allocation8 + $0x24] sm:$0xf]
        %v952 = vld [vmem:[#allocation8 + $0x28] sm:$0xf]
        %v953 = vld [vmem:[#allocation8 + $0x2c] sm:$0xf]
        %v954 = vld [vmem:[#allocation8 + $0x30] sm:$0xf]
        %v955 = vld [vmem:[#allocation8 + $0x34] sm:$0xf]
        %v956 = vld [vmem:[#allocation8 + $0x38] sm:$0xf]
        %v957 = vld [vmem:[#allocation8 + $0x3c] sm:$0xf]
        %v958 = vld [vmem:[%s6] sm:$0x1]
        %v960 = vlaneseq
        %v961 = vshrl.u32 %v960, 7
        %v962 = vsub.s32 0, %v961
        %v963 = vrot.slane %v958, %v962
        %v981 = vunpack.c.l.b16 %v942
        %v982 = vunpack.c.l.b16 %v943
        %v983 = vunpack.c.l.b16 %v944
        %v984 = vunpack.c.l.b16 %v945
        %v985 = vunpack.c.l.b16 %v946
        %v986 = vunpack.c.l.b16 %v947
        %v987 = vunpack.c.l.b16 %v948
        %v988 = vunpack.c.l.b16 %v949
        %v989 = vunpack.c.l.b16 %v950
        %v990 = vunpack.c.l.b16 %v951
        %v991 = vunpack.c.l.b16 %v952
        %v992 = vunpack.c.l.b16 %v953
        %v993 = vunpack.c.l.b16 %v954
        %v994 = vunpack.c.l.b16 %v955
        %v995 = vunpack.c.l.b16 %v956
        %v996 = vunpack.c.l.b16 %v957
        %v997 = vpack.c.b16 %v982, %v981
        %v998 = vpack.c.b16 %v984, %v983
        %v999 = vpack.c.b16 %v986, %v985
        %v1000 = vpack.c.b16 %v988, %v987
        %v1001 = vpack.c.b16 %v990, %v989
        %v1002 = vpack.c.b16 %v992, %v991
        %v1003 = vpack.c.b16 %v994, %v993
        %v1004 = vpack.c.b16 %v996, %v995
        %1013 = vmatprep.subr.bf16.mxu0 0
        %1014 = vmatpush1.bf16.msra.mxu0 %v997
        %1015 = vmatprep.subr.bf16.mxu0 0
        %1016 = vmatpush1.bf16.msra.mxu0 %v998
        %1017 = vmatprep.subr.bf16.mxu0 0
        %1018 = vmatpush1.bf16.msra.mxu0 %v999
        %1019 = vmatprep.subr.bf16.mxu0 0
        %1020 = vmatpush1.bf16.msra.mxu0 %v1000
        %1021 = vmatprep.subr.bf16.mxu0 0
        %1022 = vmatpush1.bf16.msra.mxu0 %v1001
        %1023 = vmatprep.subr.bf16.mxu0 0
        %1024 = vmatpush1.bf16.msra.mxu0 %v1002
        %1025 = vmatprep.subr.bf16.mxu0 0
        %1026 = vmatpush1.bf16.msra.mxu0 %v1003
        %1027 = vmatprep.subr.bf16.mxu0 0
        %1028 = vmatpush1.bf16.msra.mxu0 %v1004
        %1029 = vmatprep.subr.bf16.mxu0 0
        %1030 = vmatpush1.bf16.msra.mxu0 0
        %1031 = vmatprep.subr.bf16.mxu0 0
        %1032 = vmatpush1.bf16.msra.mxu0 0
        %1033 = vmatprep.subr.bf16.mxu0 0
        %1034 = vmatpush1.bf16.msra.mxu0 0
        %1035 = vmatprep.subr.bf16.mxu0 0
        %1036 = vmatpush1.bf16.msra.mxu0 0
        %1037 = vmatprep.subr.bf16.mxu0 0
        %1038 = vmatpush1.bf16.msra.mxu0 0
        %1039 = vmatprep.subr.bf16.mxu0 0
        %1040 = vmatpush1.bf16.msra.mxu0 0
        %1041 = vmatprep.subr.bf16.mxu0 0
        %1042 = vmatpush1.bf16.msra.mxu0 0
        %1043 = vmatprep.subr.bf16.mxu0 0
        %1044 = vmatpush1.bf16.msra.mxu0 0
        %1045 = vmatprep.mubr.bf16.mxu0 0
        %1046 = vmatmul.mubr.bf16.gmra.mrb[0].mxu0 %v935
        %v1047 = vpop.f32.mrb[0].mxu0
        %v1048 = vadd.f32 %v963, %v1047
        %v1049 = vpop.f32.mrb[0].mxu0
        %v1050 = vpop.f32.mrb[0].mxu0
        %v1051 = vadd.f32 %v963, %v1050
        %v1052 = vpop.f32.mrb[0].mxu0
        %1053 = vmatprep.mubr.bf16.mxu0 0
        %1054 = vmatmul.mubr.bf16.gmra.mrb[0].mxu0 %v936
        %v1055 = vpop.f32.mrb[0].mxu0
        %v1056 = vadd.f32 %v963, %v1055
        %v1057 = vpop.f32.mrb[0].mxu0
        %v1058 = vpop.f32.mrb[0].mxu0
        %v1059 = vadd.f32 %v963, %v1058
        %v1060 = vpop.f32.mrb[0].mxu0
        %1061 = vmatprep.mubr.bf16.mxu0 0
        %1062 = vmatmul.mubr.bf16.gmra.mrb[0].mxu0 %v937
        %v1063 = vpop.f32.mrb[0].mxu0
        %v1064 = vadd.f32 %v963, %v1063
        %v1065 = vpop.f32.mrb[0].mxu0
        %v1066 = vpop.f32.mrb[0].mxu0
        %v1067 = vadd.f32 %v963, %v1066
        %v1068 = vpop.f32.mrb[0].mxu0
        %1069 = vmatprep.mubr.bf16.mxu0 0
        %1070 = vmatmul.mubr.bf16.gmra.mrb[0].mxu0 %v938
        %v1071 = vpop.f32.mrb[0].mxu0
        %v1072 = vadd.f32 %v963, %v1071
        %v1073 = vpop.f32.mrb[0].mxu0
        %v1074 = vpop.f32.mrb[0].mxu0
        %v1075 = vadd.f32 %v963, %v1074
        %v1076 = vpop.f32.mrb[0].mxu0
        %1077 = vmatprep.mubr.bf16.mxu0 0
        %1078 = vmatmul.mubr.bf16.gmra.mrb[0].mxu0 %v939
        %v1079 = vpop.f32.mrb[0].mxu0
        %v1080 = vadd.f32 %v963, %v1079
        %v1081 = vpop.f32.mrb[0].mxu0
        %v1082 = vpop.f32.mrb[0].mxu0
        %v1083 = vadd.f32 %v963, %v1082
        %v1084 = vpop.f32.mrb[0].mxu0
        %1085 = vmatprep.mubr.bf16.mxu0 0
        %1086 = vmatmul.mubr.bf16.gmra.mrb[0].mxu0 %v940
        %v1087 = vpop.f32.mrb[0].mxu0
        %v1088 = vadd.f32 %v963, %v1087
        %v1089 = vpop.f32.mrb[0].mxu0
        %v1090 = vpop.f32.mrb[0].mxu0
        %v1091 = vadd.f32 %v963, %v1090
        %v1092 = vpop.f32.mrb[0].mxu0
        %1093 = vmatprep.mubr.bf16.mxu0 0
        %1094 = vmatmul.mubr.bf16.gmra.mrb[0].mxu0 %v941
        %v1095 = vpop.f32.mrb[0].mxu0
        %v1096 = vadd.f32 %v963, %v1095
        %v1097 = vpop.f32.mrb[0].mxu0
        %v1098 = vpop.f32.mrb[0].mxu0
        %v1099 = vadd.f32 %v963, %v1098
        %v1100 = vpop.f32.mrb[0].mxu0
        %1101 = vdwg.mxu0
        %v1102 = vmax.f32 %v1048, 0.0
        %v1103 = vmax.f32 %v1051, 0.0
        %v1104 = vmax.f32 %v1056, 0.0
        %v1105 = vmax.f32 %v1059, 0.0
        %v1106 = vmax.f32 %v1064, 0.0
        %v1107 = vmax.f32 %v1067, 0.0
        %v1108 = vmax.f32 %v1072, 0.0
        %v1109 = vmax.f32 %v1075, 0.0
        %v1110 = vmax.f32 %v1080, 0.0
        %v1111 = vmax.f32 %v1083, 0.0
        %v1112 = vmax.f32 %v1088, 0.0
        %v1113 = vmax.f32 %v1091, 0.0
        %v1114 = vmax.f32 %v1096, 0.0
        %v1115 = vmax.f32 %v1099, 0.0
        %v1116 = vpack.c.bf16 %v1103, %v1102
        %v1117 = vpack.c.bf16 %v1105, %v1104
        %v1118 = vpack.c.bf16 %v1107, %v1106
        %v1119 = vpack.c.bf16 %v1109, %v1108
        %v1120 = vpack.c.bf16 %v1111, %v1110
        %v1121 = vpack.c.bf16 %v1113, %v1112
        %v1122 = vpack.c.bf16 %v1115, %v1114
        %v1123 = vld [vmem:[#allocation10] sm:$0xf]
        %v1124 = vld [vmem:[#allocation10 + $0x4] sm:$0xf]
        %v1125 = vld [vmem:[#allocation10 + $0x8] sm:$0xf]
        %v1126 = vld [vmem:[#allocation10 + $0xc] sm:$0xf]
        %v1127 = vld [vmem:[#allocation10 + $0x10] sm:$0xf]
        %v1128 = vld [vmem:[#allocation10 + $0x14] sm:$0xf]
        %v1129 = vld [vmem:[#allocation10 + $0x18] sm:$0xf]
        %v1130 = vld [vmem:[#allocation10 + $0x1c] sm:$0xf]
        %v1131 = vld [vmem:[#allocation10 + $0x20] sm:$0xf]
        %v1132 = vld [vmem:[#allocation10 + $0x24] sm:$0xf]
        %v1133 = vld [vmem:[#allocation10 + $0x28] sm:$0xf]
        %v1134 = vld [vmem:[#allocation10 + $0x2c] sm:$0xf]
        %v1135 = vld [vmem:[#allocation10 + $0x30] sm:$0xf]
        %v1136 = vld [vmem:[#allocation10 + $0x34] sm:$0xf]
        %v1137 = vld [vmem:[#allocation10 + $0x38] sm:$0xf]
        %v1138 = vld [vmem:[#allocation10 + $0x3c] sm:$0xf]
        %v1139 = vld [vmem:[%s8] sm:$0x1]
        %v1141 = vlaneseq
        %v1142 = vshrl.u32 %v1141, 7
        %v1143 = vsub.s32 0, %v1142
        %v1144 = vrot.slane %v1139, %v1143
        %v1162 = vunpack.c.l.b16 %v1123
        %v1163 = vunpack.c.l.b16 %v1124
        %v1164 = vunpack.c.l.b16 %v1125
        %v1165 = vunpack.c.l.b16 %v1126
        %v1166 = vunpack.c.l.b16 %v1127
        %v1167 = vunpack.c.l.b16 %v1128
        %v1168 = vunpack.c.l.b16 %v1129
        %v1169 = vunpack.c.l.b16 %v1130
        %v1170 = vunpack.c.l.b16 %v1131
        %v1171 = vunpack.c.l.b16 %v1132
        %v1172 = vunpack.c.l.b16 %v1133
        %v1173 = vunpack.c.l.b16 %v1134
        %v1174 = vunpack.c.l.b16 %v1135
        %v1175 = vunpack.c.l.b16 %v1136
        %v1176 = vunpack.c.l.b16 %v1137
        %v1177 = vunpack.c.l.b16 %v1138
        %v1178 = vpack.c.b16 %v1163, %v1162
        %v1179 = vpack.c.b16 %v1165, %v1164
        %v1180 = vpack.c.b16 %v1167, %v1166
        %v1181 = vpack.c.b16 %v1169, %v1168
        %v1182 = vpack.c.b16 %v1171, %v1170
        %v1183 = vpack.c.b16 %v1173, %v1172
        %v1184 = vpack.c.b16 %v1175, %v1174
        %v1185 = vpack.c.b16 %v1177, %v1176
        %1194 = vmatprep.subr.bf16.mxu0 0
        %1195 = vmatpush1.bf16.msra.mxu0 %v1178
        %1196 = vmatprep.subr.bf16.mxu0 0
        %1197 = vmatpush1.bf16.msra.mxu0 %v1179
        %1198 = vmatprep.subr.bf16.mxu0 0
        %1199 = vmatpush1.bf16.msra.mxu0 %v1180
        %1200 = vmatprep.subr.bf16.mxu0 0
        %1201 = vmatpush1.bf16.msra.mxu0 %v1181
        %1202 = vmatprep.subr.bf16.mxu0 0
        %1203 = vmatpush1.bf16.msra.mxu0 %v1182
        %1204 = vmatprep.subr.bf16.mxu0 0
        %1205 = vmatpush1.bf16.msra.mxu0 %v1183
        %1206 = vmatprep.subr.bf16.mxu0 0
        %1207 = vmatpush1.bf16.msra.mxu0 %v1184
        %1208 = vmatprep.subr.bf16.mxu0 0
        %1209 = vmatpush1.bf16.msra.mxu0 %v1185
        %1210 = vmatprep.subr.bf16.mxu0 0
        %1211 = vmatpush1.bf16.msra.mxu0 0
        %1212 = vmatprep.subr.bf16.mxu0 0
        %1213 = vmatpush1.bf16.msra.mxu0 0
        %1214 = vmatprep.subr.bf16.mxu0 0
        %1215 = vmatpush1.bf16.msra.mxu0 0
        %1216 = vmatprep.subr.bf16.mxu0 0
        %1217 = vmatpush1.bf16.msra.mxu0 0
        %1218 = vmatprep.subr.bf16.mxu0 0
        %1219 = vmatpush1.bf16.msra.mxu0 0
        %1220 = vmatprep.subr.bf16.mxu0 0
        %1221 = vmatpush1.bf16.msra.mxu0 0
        %1222 = vmatprep.subr.bf16.mxu0 0
        %1223 = vmatpush1.bf16.msra.mxu0 0
        %1224 = vmatprep.subr.bf16.mxu0 0
        %1225 = vmatpush1.bf16.msra.mxu0 0
        %1226 = vmatprep.mubr.bf16.mxu0 0
        %1227 = vmatmul.mubr.bf16.gmra.mrb[0].mxu0 %v1116
        %v1228 = vpop.f32.mrb[0].mxu0
        %v1229 = vadd.f32 %v1144, %v1228
        %v1230 = vpop.f32.mrb[0].mxu0
        %v1231 = vpop.f32.mrb[0].mxu0
        %v1232 = vadd.f32 %v1144, %v1231
        %v1233 = vpop.f32.mrb[0].mxu0
        %1234 = vmatprep.mubr.bf16.mxu0 0
        %1235 = vmatmul.mubr.bf16.gmra.mrb[0].mxu0 %v1117
        %v1236 = vpop.f32.mrb[0].mxu0
        %v1237 = vadd.f32 %v1144, %v1236
        %v1238 = vpop.f32.mrb[0].mxu0
        %v1239 = vpop.f32.mrb[0].mxu0
        %v1240 = vadd.f32 %v1144, %v1239
        %v1241 = vpop.f32.mrb[0].mxu0
        %1242 = vmatprep.mubr.bf16.mxu0 0
        %1243 = vmatmul.mubr.bf16.gmra.mrb[0].mxu0 %v1118
        %v1244 = vpop.f32.mrb[0].mxu0
        %v1245 = vadd.f32 %v1144, %v1244
        %v1246 = vpop.f32.mrb[0].mxu0
        %v1247 = vpop.f32.mrb[0].mxu0
        %v1248 = vadd.f32 %v1144, %v1247
        %v1249 = vpop.f32.mrb[0].mxu0
        %1250 = vmatprep.mubr.bf16.mxu0 0
        %1251 = vmatmul.mubr.bf16.gmra.mrb[0].mxu0 %v1119
        %v1252 = vpop.f32.mrb[0].mxu0
        %v1253 = vadd.f32 %v1144, %v1252
        %v1254 = vpop.f32.mrb[0].mxu0
        %v1255 = vpop.f32.mrb[0].mxu0
        %v1256 = vadd.f32 %v1144, %v1255
        %v1257 = vpop.f32.mrb[0].mxu0
        %1258 = vmatprep.mubr.bf16.mxu0 0
        %1259 = vmatmul.mubr.bf16.gmra.mrb[0].mxu0 %v1120
        %v1260 = vpop.f32.mrb[0].mxu0
        %v1261 = vadd.f32 %v1144, %v1260
        %v1262 = vpop.f32.mrb[0].mxu0
        %v1263 = vpop.f32.mrb[0].mxu0
        %v1264 = vadd.f32 %v1144, %v1263
        %v1265 = vpop.f32.mrb[0].mxu0
        %1266 = vmatprep.mubr.bf16.mxu0 0
        %1267 = vmatmul.mubr.bf16.gmra.mrb[0].mxu0 %v1121
        %v1268 = vpop.f32.mrb[0].mxu0
        %v1269 = vadd.f32 %v1144, %v1268
        %v1270 = vpop.f32.mrb[0].mxu0
        %v1271 = vpop.f32.mrb[0].mxu0
        %v1272 = vadd.f32 %v1144, %v1271
        %v1273 = vpop.f32.mrb[0].mxu0
        %1274 = vmatprep.mubr.bf16.mxu0 0
        %1275 = vmatmul.mubr.bf16.gmra.mrb[0].mxu0 %v1122
        %v1276 = vpop.f32.mrb[0].mxu0
        %v1277 = vadd.f32 %v1144, %v1276
        %v1278 = vpop.f32.mrb[0].mxu0
        %v1279 = vpop.f32.mrb[0].mxu0
        %v1280 = vadd.f32 %v1144, %v1279
        %v1281 = vpop.f32.mrb[0].mxu0
        %1282 = vdwg.mxu0
        %v1283 = vsub.f32 0.0, %v1229
        %v1284 = vsub.f32 0.0, %v1232
        %v1285 = vsub.f32 0.0, %v1237
        %v1286 = vsub.f32 0.0, %v1240
        %v1287 = vsub.f32 0.0, %v1245
        %v1288 = vsub.f32 0.0, %v1248
        %v1289 = vsub.f32 0.0, %v1253
        %v1290 = vsub.f32 0.0, %v1256
        %v1291 = vsub.f32 0.0, %v1261
        %v1292 = vsub.f32 0.0, %v1264
        %v1293 = vsub.f32 0.0, %v1269
        %v1294 = vsub.f32 0.0, %v1272
        %v1295 = vsub.f32 0.0, %v1277
        %v1296 = vsub.f32 0.0, %v1280
        %v1297 = vmul.f32 %v1283, 1.442695
        %v1298 = vpow.pop %v1297
        %v1299 = vmul.f32 %v1284, 1.442695
        %v1300 = vpow.pop %v1299
        %v1301 = vmul.f32 %v1285, 1.442695
        %v1302 = vpow.pop %v1301
        %v1303 = vmul.f32 %v1286, 1.442695
        %v1304 = vpow.pop %v1303
        %v1305 = vmul.f32 %v1287, 1.442695
        %v1306 = vpow.pop %v1305
        %v1307 = vmul.f32 %v1288, 1.442695
        %v1308 = vpow.pop %v1307
        %v1309 = vmul.f32 %v1289, 1.442695
        %v1310 = vpow.pop %v1309
        %v1311 = vmul.f32 %v1290, 1.442695
        %v1312 = vpow.pop %v1311
        %v1313 = vmul.f32 %v1291, 1.442695
        %v1314 = vpow.pop %v1313
        %v1315 = vmul.f32 %v1292, 1.442695
        %v1316 = vpow.pop %v1315
        %v1317 = vmul.f32 %v1293, 1.442695
        %v1318 = vpow.pop %v1317
        %v1319 = vmul.f32 %v1294, 1.442695
        %v1320 = vpow.pop %v1319
        %v1321 = vmul.f32 %v1295, 1.442695
        %v1322 = vpow.pop %v1321
        %v1323 = vmul.f32 %v1296, 1.442695
        %v1324 = vpow.pop %v1323
        %v1325 = vadd.f32 %v1298, 1.0
        %v1326 = vadd.f32 %v1300, 1.0
        %v1327 = vadd.f32 %v1302, 1.0
        %v1328 = vadd.f32 %v1304, 1.0
        %v1329 = vadd.f32 %v1306, 1.0
        %v1330 = vadd.f32 %v1308, 1.0
        %v1331 = vadd.f32 %v1310, 1.0
        %v1332 = vadd.f32 %v1312, 1.0
        %v1333 = vadd.f32 %v1314, 1.0
        %v1334 = vadd.f32 %v1316, 1.0
        %v1335 = vadd.f32 %v1318, 1.0
        %v1336 = vadd.f32 %v1320, 1.0
        %v1337 = vadd.f32 %v1322, 1.0
        %v1338 = vadd.f32 %v1324, 1.0
        %v1339 = vrcp.pop %v1325
        %v1340 = vrcp.pop %v1326
        %v1341 = vrcp.pop %v1327
        %v1342 = vrcp.pop %v1328
        %v1343 = vrcp.pop %v1329
        %v1344 = vrcp.pop %v1330
        %v1345 = vrcp.pop %v1331
        %v1346 = vrcp.pop %v1332
        %v1347 = vrcp.pop %v1333
        %v1348 = vrcp.pop %v1334
        %v1349 = vrcp.pop %v1335
        %v1350 = vrcp.pop %v1336
        %v1351 = vrcp.pop %v1337
        %v1352 = vrcp.pop %v1338
        %1353 = vst [vmem:[%s408] sm:$0xff] %v1339
        %1354 = vst [vmem:[%s408 + $0x8] sm:$0xff] %v1340
        %1355 = vst [vmem:[%s408 + $0x10] sm:$0xff] %v1341
        %1356 = vst [vmem:[%s408 + $0x18] sm:$0xff] %v1342
        %1357 = vst [vmem:[%s408 + $0x20] sm:$0xff] %v1343
        %1358 = vst [vmem:[%s408 + $0x28] sm:$0xff] %v1344
        %1359 = vst [vmem:[%s408 + $0x30] sm:$0xff] %v1345
        %1360 = vst [vmem:[%s408 + $0x38] sm:$0xff] %v1346
        %1361 = vst [vmem:[%s408 + $0x40] sm:$0xff] %v1347
        %1362 = vst [vmem:[%s408 + $0x48] sm:$0xff] %v1348
        %1363 = vst [vmem:[%s408 + $0x50] sm:$0xff] %v1349
        %1364 = vst [vmem:[%s408 + $0x58] sm:$0xff] %v1350
        %1365 = vst [vmem:[%s408 + $0x60] sm:$0xff] %v1351
        %1366 = vst [vmem:[%s408 + $0x68] sm:$0xff] %v1352
        %s1367 = sand.u32 %s230, 1
        %s1368 = scalar_lea.sflag [#allocation4], %s1367
        %s1369 = sand.u32 %s230, 1
        %s1370 = smul.addr %s1369, 112
        %s1371 = scalar_lea.vmem [#allocation11], %s1370
        // Predicated region
        $region77: #{tpu_custom_call.1} parent=55 // pred_check
          %p1372 = pneg %p240
        $region78: #{tpu_custom_call.1} parent=55 // pred_check_branch
          %1374 = sbr.rel (%p1372) target = $region80
        $region79: #{tpu_custom_call.1} parent=55 // pred_region
          %s1375 = smul.u32 14, %s28
          %s1377 = ssub.s32 1792, 1792
          %1378 = vsyncadd %s1368, %s1377
          %s1379 = smul.addr %s1375, 128
          %s1380 = scalar_lea.hbm %s9, %s1379
          %s1381 = sshll.u32 %s1371, 4
          %s1382 = int_to_ptr.vmem [resolvable:$true] %s1381
          %1387 = dma.vmem_to_hbm [thread:$0]  %s1382, 1792, %s1380, %s1368, 128, 128, 8
        $region80: #{tpu_custom_call.1} parent=55 // pred_fallthru
          _
      $region56: #{tpu_custom_call.1} parent=5 // pred_fallthru
        _
      %p1388 = scmp.le.s32.totalorder 2, %s23
      // Predicated region
      $region81: #{tpu_custom_call.1} parent=5 // pred_check
        %p1389 = pneg %p1388
      $region82: #{tpu_custom_call.1} parent=5 // pred_check_branch
        %1391 = sbr.rel (%p1389) target = $region84
      $region83: #{tpu_custom_call.1} parent=5 // pred_region
        %s1392 = ssub.s32 %s23, 2
        // Predicated region
        $region85: #{tpu_custom_call.1} parent=83 // pred_check
          %p1393 = pneg %p246
        $region86: #{tpu_custom_call.1} parent=83 // pred_check_branch
          %1395 = sbr.rel (%p1393) target = $region88
        $region87: #{tpu_custom_call.1} parent=83 // pred_region
          %s1396 = sand.u32 %s231, 1
          %s1397 = scalar_lea.sflag [#allocation4], %s1396
          %s1398 = sand.u32 %s231, 1
          %s1399 = smul.addr %s1398, 112
          %s1400 = scalar_lea.vmem [#allocation11], %s1399
          %1401 = dma.done %s1397, 1792
        $region88: #{tpu_custom_call.1} parent=83 // pred_fallthru
          _
      $region84: #{tpu_custom_call.1} parent=5 // pred_fallthru
        _
    $region6: #{tpu_custom_call.1} parent=1 // loop_footer
      %s27 = sadd.s32 1, %s23
    $region7: #{tpu_custom_call.1} parent=1 // loop_footer_branch
      %22 = sbr.rel target = $region3
    $region8: #{tpu_custom_call.1} parent=1 // loop_exit
      _
    %1402 = vsyncpa [#allocation3], 1
    %s1403 = scalar_lea.sflag [#allocation3], 1
    %1404 = vsyncpa %s1403, 1
    %1405 = vsyncpa [#allocation6], 1
    %1406 = vsyncpa [#allocation9], 1
    %1407 = vsyncpa [#allocation4], 1
    %s1408 = scalar_lea.sflag [#allocation4], 1
    %1409 = vsyncpa %s1408, 1

// kernel: tpu_custom_call.1
$region0: #{tpu_custom_call.1}
  #allocation0 [shape = 'u32[]', space=smem, size = 0x4, offset = 0x4, fixed_abs, tag = 'smem constant byte address 0x4 - core index']
  #allocation1 [shape = 'u32[144,128]{1,0:T(1,128)}', space=vmem, size = 0x12000, scoped, tag = 'internal scratch']
  %s0 = inlined_call_operand.hbm [shape: bf16[224,128], index: 0, kind: input, shape index: {}]
  %s1 = inlined_call_operand.hbm [shape: bf16[128,128], index: 1, kind: input, shape index: {}]
  %s2 = inlined_call_operand.vmem [shape: f32[1,128], index: 2, kind: input, shape index: {}]
  %s3 = inlined_call_operand.hbm [shape: bf16[128,128], index: 3, kind: input, shape index: {}]
  %s4 = inlined_call_operand.vmem [shape: f32[1,128], index: 4, kind: input, shape index: {}]
  %s5 = inlined_call_operand.hbm [shape: bf16[128,128], index: 5, kind: input, shape index: {}]
  %s6 = inlined_call_operand.vmem [shape: f32[1,128], index: 6, kind: input, shape index: {}]
  %s7 = inlined_call_operand.hbm [shape: bf16[128,128], index: 7, kind: input, shape index: {}]
  %s8 = inlined_call_operand.vmem [shape: f32[1,128], index: 8, kind: input, shape index: {}]
  %s9 = inlined_call_operand.hbm [shape: f32[224,128], index: 9, kind: output, shape index: {}]
  %s10 = sld [smem:[#allocation0]]
  $region89: #{tpu_custom_call.1} parent=0
    _
  %s12 = ssub.s32 1, %s10
  %s13 = scalar_select 0, %s12, %s10
  $region1: #{tpu_custom_call.1} parent=0
    #allocation2 [shape = 'u8[57344]{0}', space=vmem, size = 0xe000, scoped, tag = 'input window, operand 0']
    #allocation3 [shape = 's32[2]{0}', space=sflag, size = 0x8, scoped, tag = 'scoped memory for tpu_custom_call.1']
    #allocation4 [shape = 's32[2]{0}', space=sflag, size = 0x8, scoped, tag = 'scoped memory for tpu_custom_call.1']
    #allocation5 [shape = 'u8[32768]{0}', space=vmem, size = 0x8000, scoped, tag = 'input window, operand 1, single buffered']
    #allocation6 [shape = 's32[1]{0}', space=sflag, size = 0x4, scoped, tag = 'scoped memory for tpu_custom_call.1']
    #allocation7 [shape = 'u8[32768]{0}', space=vmem, size = 0x8000, scoped, tag = 'input window, operand 3, single buffered']
    #allocation8 [shape = 'u8[32768]{0}', space=vmem, size = 0x8000, scoped, tag = 'input window, operand 5, single buffered']
    #allocation9 [shape = 's32[1]{0}', space=sflag, size = 0x4, scoped, tag = 'scoped memory for tpu_custom_call.1']
    #allocation10 [shape = 'u8[32768]{0}', space=vmem, size = 0x8000, scoped, tag = 'input window, operand 7, single buffered']
    #allocation11 [shape = 'u8[114688]{0}', space=vmem, size = 0x1c000, scoped, tag = 'output window, operand 0']
    %14 = vsyncpa [#allocation3], 0
    %s15 = scalar_lea.sflag [#allocation3], 1
    %16 = vsyncpa %s15, 0
    %17 = vsyncpa [#allocation6], 0
    %18 = vsyncpa [#allocation9], 0
    %19 = vsyncpa [#allocation4], 0
    %s20 = scalar_lea.sflag [#allocation4], 1
    %21 = vsyncpa %s20, 0
    loop: start=0, step=1, limit=4
    $region2: #{tpu_custom_call.1} parent=1 // loop_pre_header
      _
    $region3: #{tpu_custom_call.1} parent=1 // loop_header
      %s23 = sphi 0, %s27
      %p24 = scmp.ge.s32.totalorder %s23, 4
      %s33 = sphi 0, %s35
      %s36 = sphi 0, %s33
      %s37 = sphi 0, %s36
      %s53 = sphi 0, %s37
      %s57 = sphi 0, %s57
      %s59 = sphi 0, %s57
      %s60 = sphi 0, %s59
      %s74 = sphi 0, %s60
      %s78 = sphi 0, %s78
      %s80 = sphi 0, %s78
      %s81 = sphi 0, %s80
      %s95 = sphi 0, %s81
      %s99 = sphi 0, %s99
      %s101 = sphi 0, %s99
      %s102 = sphi 0, %s101
      %s116 = sphi 0, %s102
      %s120 = sphi 0, %s120
      %s122 = sphi 0, %s120
      %s123 = sphi 0, %s122
      %s137 = sphi 0, %s123
      %s141 = sphi 0, %s141
      %s143 = sphi 0, %s141
      %s144 = sphi 0, %s143
      %s158 = sphi 0, %s144
      %s162 = sphi 0, %s162
      %s164 = sphi 0, %s162
      %s165 = sphi 0, %s164
      %s179 = sphi 0, %s165
      %s183 = sphi 0, %s183
      %s185 = sphi 0, %s183
      %s186 = sphi 0, %s185
      %s200 = sphi 0, %s186
      %s204 = sphi 0, %s204
      %s206 = sphi 0, %s204
      %s207 = sphi 0, %s206
      %s221 = sphi 0, %s207
      %s227 = sphi 0, %s229
      %s230 = sphi 0, %s227
      %s231 = sphi 0, %s230
      %s247 = sphi 0, %s231
    $region4: #{tpu_custom_call.1} parent=1 // loop_header_branch
      %26 = sbr.rel (%p24) target = $region8
    $region5: #{tpu_custom_call.1} parent=1 // loop_body
      %s28 = ssub.s32 %s23, 1
      %s29 = ssub.s32 %s23, 2
      %s30 = sadd.s32 %s23, 1
      %s31 = ssub.s32 %s23, %s30
      %p32 = scmp.eq.s32.totalorder %s31, 0
      %s34 = sadd.s32 %s33, 1
      %s35 = scalar_select %p32, %s33, %s34
      %p38 = pneg %p32
      %p39 = scmp.eq.s32.totalorder %s23, 1
      %p40 = por %p38, %p39
      %p41 = scmp.ne.s32.totalorder %s33, %s36
      %p42 = scmp.eq.s32.totalorder %s23, 0
      %p43 = por %p41, %p42
      %p44 = scmp.ne.s32.totalorder %s33, %s36
      %p45 = scmp.eq.s32.totalorder %s28, 1
      %p46 = por %p44, %p45
      %p47 = scmp.ne.s32.totalorder %s36, %s37
      %p48 = scmp.eq.s32.totalorder %s28, 0
      %p49 = por %p47, %p48
      %p50 = scmp.ne.s32.totalorder %s36, %s37
      %p51 = scmp.eq.s32.totalorder %s29, 1
      %p52 = por %p50, %p51
      %p54 = scmp.ne.s32.totalorder %s37, %s53
      %p55 = scmp.eq.s32.totalorder %s29, 0
      %p56 = por %p54, %p55
      %s58 = sadd.s32 %s57, 1
      %p61 = scmp.eq.s32.totalorder %s23, 1
      %p62 = scmp.ne.s32.totalorder %s57, %s59
      %p63 = scmp.eq.s32.totalorder %s23, 0
      %p64 = por %p62, %p63
      %p65 = scmp.ne.s32.totalorder %s57, %s59
      %p66 = scmp.eq.s32.totalorder %s28, 1
      %p67 = por %p65, %p66
      %p68 = scmp.ne.s32.totalorder %s59, %s60
      %p69 = scmp.eq.s32.totalorder %s28, 0
      %p70 = por %p68, %p69
      %p71 = scmp.ne.s32.totalorder %s59, %s60
      %p72 = scmp.eq.s32.totalorder %s29, 1
      %p73 = por %p71, %p72
      %p75 = scmp.ne.s32.totalorder %s60, %s74
      %p76 = scmp.eq.s32.totalorder %s29, 0
      %p77 = por %p75, %p76
      %s79 = sadd.s32 %s78, 1
      %p82 = scmp.eq.s32.totalorder %s23, 1
      %p83 = scmp.ne.s32.totalorder %s78, %s80
      %p84 = scmp.eq.s32.totalorder %s23, 0
      %p85 = por %p83, %p84
      %p86 = scmp.ne.s32.totalorder %s78, %s80
      %p87 = scmp.eq.s32.totalorder %s28, 1
      %p88 = por %p86, %p87
      %p89 = scmp.ne.s32.totalorder %s80, %s81
      %p90 = scmp.eq.s32.totalorder %s28, 0
      %p91 = por %p89, %p90
      %p92 = scmp.ne.s32.totalorder %s80, %s81
      %p93 = scmp.eq.s32.totalorder %s29, 1
      %p94 = por %p92, %p93
      %p96 = scmp.ne.s32.totalorder %s81, %s95
      %p97 = scmp.eq.s32.totalorder %s29, 0
      %p98 = por %p96, %p97
      %s100 = sadd.s32 %s99, 1
      %p103 = scmp.eq.s32.totalorder %s23, 1
      %p104 = scmp.ne.s32.totalorder %s99, %s101
      %p105 = scmp.eq.s32.totalorder %s23, 0
      %p106 = por %p104, %p105
      %p107 = scmp.ne.s32.totalorder %s99, %s101
      %p108 = scmp.eq.s32.totalorder %s28, 1
      %p109 = por %p107, %p108
      %p110 = scmp.ne.s32.totalorder %s101, %s102
      %p111 = scmp.eq.s32.totalorder %s28, 0
      %p112 = por %p110, %p111
      %p113 = scmp.ne.s32.totalorder %s101, %s102
      %p114 = scmp.eq.s32.totalorder %s29, 1
      %p115 = por %p113, %p114
      %p117 = scmp.ne.s32.totalorder %s102, %s116
      %p118 = scmp.eq.s32.totalorder %s29, 0
      %p119 = por %p117, %p118
      %s121 = sadd.s32 %s120, 1
      %p124 = scmp.eq.s32.totalorder %s23, 1
      %p125 = scmp.ne.s32.totalorder %s120, %s122
      %p126 = scmp.eq.s32.totalorder %s23, 0
      %p127 = por %p125, %p126
      %p128 = scmp.ne.s32.totalorder %s120, %s122
      %p129 = scmp.eq.s32.totalorder %s28, 1
      %p130 = por %p128, %p129
      %p131 = scmp.ne.s32.totalorder %s122, %s123
      %p132 = scmp.eq.s32.totalorder %s28, 0
      %p133 = por %p131, %p132
      %p134 = scmp.ne.s32.totalorder %s122, %s123
      %p135 = scmp.eq.s32.totalorder %s29, 1
      %p136 = por %p134, %p135
      %p138 = scmp.ne.s32.totalorder %s123, %s137
      %p139 = scmp.eq.s32.totalorder %s29, 0
      %p140 = por %p138, %p139
      %s142 = sadd.s32 %s141, 1
      %p145 = scmp.eq.s32.totalorder %s23, 1
      %p146 = scmp.ne.s32.totalorder %s141, %s143
      %p147 = scmp.eq.s32.totalorder %s23, 0
      %p148 = por %p146, %p147
      %p149 = scmp.ne.s32.totalorder %s141, %s143
      %p150 = scmp.eq.s32.totalorder %s28, 1
      %p151 = por %p149, %p150
      %p152 = scmp.ne.s32.totalorder %s143, %s144
      %p153 = scmp.eq.s32.totalorder %s28, 0
      %p154 = por %p152, %p153
      %p155 = scmp.ne.s32.totalorder %s143, %s144
      %p156 = scmp.eq.s32.totalorder %s29, 1
      %p157 = por %p155, %p156
      %p159 = scmp.ne.s32.totalorder %s144, %s158
      %p160 = scmp.eq.s32.totalorder %s29, 0
      %p161 = por %p159, %p160
      %s163 = sadd.s32 %s162, 1
      %p166 = scmp.eq.s32.totalorder %s23, 1
      %p167 = scmp.ne.s32.totalorder %s162, %s164
      %p168 = scmp.eq.s32.totalorder %s23, 0
      %p169 = por %p167, %p168
      %p170 = scmp.ne.s32.totalorder %s162, %s164
      %p171 = scmp.eq.s32.totalorder %s28, 1
      %p172 = por %p170, %p171
      %p173 = scmp.ne.s32.totalorder %s164, %s165
      %p174 = scmp.eq.s32.totalorder %s28, 0
      %p175 = por %p173, %p174
      %p176 = scmp.ne.s32.totalorder %s164, %s165
      %p177 = scmp.eq.s32.totalorder %s29, 1
      %p178 = por %p176, %p177
      %p180 = scmp.ne.s32.totalorder %s165, %s179
      %p181 = scmp.eq.s32.totalorder %s29, 0
      %p182 = por %p180, %p181
      %s184 = sadd.s32 %s183, 1
      %p187 = scmp.eq.s32.totalorder %s23, 1
      %p188 = scmp.ne.s32.totalorder %s183, %s185
      %p189 = scmp.eq.s32.totalorder %s23, 0
      %p190 = por %p188, %p189
      %p191 = scmp.ne.s32.totalorder %s183, %s185
      %p192 = scmp.eq.s32.totalorder %s28, 1
      %p193 = por %p191, %p192
      %p194 = scmp.ne.s32.totalorder %s185, %s186
      %p195 = scmp.eq.s32.totalorder %s28, 0
      %p196 = por %p194, %p195
      %p197 = scmp.ne.s32.totalorder %s185, %s186
      %p198 = scmp.eq.s32.totalorder %s29, 1
      %p199 = por %p197, %p198
      %p201 = scmp.ne.s32.totalorder %s186, %s200
      %p202 = scmp.eq.s32.totalorder %s29, 0
      %p203 = por %p201, %p202
      %s205 = sadd.s32 %s204, 1
      %p208 = scmp.eq.s32.totalorder %s23, 1
      %p209 = scmp.ne.s32.totalorder %s204, %s206
      %p210 = scmp.eq.s32.totalorder %s23, 0
      %p211 = por %p209, %p210
      %p212 = scmp.ne.s32.totalorder %s204, %s206
      %p213 = scmp.eq.s32.totalorder %s28, 1
      %p214 = por %p212, %p213
      %p215 = scmp.ne.s32.totalorder %s206, %s207
      %p216 = scmp.eq.s32.totalorder %s28, 0
      %p217 = por %p215, %p216
      %p218 = scmp.ne.s32.totalorder %s206, %s207
      %p219 = scmp.eq.s32.totalorder %s29, 1
      %p220 = por %p218, %p219
      %p222 = scmp.ne.s32.totalorder %s207, %s221
      %p223 = scmp.eq.s32.totalorder %s29, 0
      %p224 = por %p222, %p223
      %s225 = ssub.s32 %s23, %s30
      %p226 = scmp.eq.s32.totalorder %s225, 0
      %s228 = sadd.s32 %s227, 1
      %s229 = scalar_select %p226, %s227, %s228
      %p232 = pneg %p226
      %p233 = scmp.eq.s32.totalorder %s23, 1
      %p234 = por %p232, %p233
      %p235 = scmp.ne.s32.totalorder %s227, %s230
      %p236 = scmp.eq.s32.totalorder %s23, 0
      %p237 = por %p235, %p236
      %p238 = scmp.ne.s32.totalorder %s227, %s230
      %p239 = scmp.eq.s32.totalorder %s28, 1
      %p240 = por %p238, %p239
      %p241 = scmp.ne.s32.totalorder %s230, %s231
      %p242 = scmp.eq.s32.totalorder %s28, 0
      %p243 = por %p241, %p242
      %p244 = scmp.ne.s32.totalorder %s230, %s231
      %p245 = scmp.eq.s32.totalorder %s29, 1
      %p246 = por %p244, %p245
      %p248 = scmp.ne.s32.totalorder %s231, %s247
      %p249 = scmp.eq.s32.totalorder %s29, 0
      %p250 = por %p248, %p249
      %p251 = scmp.le.s32.totalorder 1, %s23
      %p252 = scmp.lt.s32.totalorder %s23, 3
      %p253 = pnand %p251, %p252
      %p254 = pneg %p253
      // Predicated region
      $region9: #{tpu_custom_call.1} parent=5 // pred_check
        _
      $region10: #{tpu_custom_call.1} parent=5 // pred_check_branch
        %256 = sbr.rel (%p253) target = $region12
      $region11: #{tpu_custom_call.1} parent=5 // pred_region
        %s257 = ssub.s32 %s23, 1
        // Predicated region
        $region13: #{tpu_custom_call.1} parent=11 // pred_check
          %p258 = pneg %p70
        $region14: #{tpu_custom_call.1} parent=11 // pred_check_branch
          %260 = sbr.rel (%p258) target = $region16
        $region15: #{tpu_custom_call.1} parent=11 // pred_region
          %s262 = ssub.s32 1024, 1024
          %263 = vsyncadd [#allocation6], %s262
          %s264 = sshll.u32 [#allocation5], 4
          %s265 = int_to_ptr.vmem [resolvable:$true] %s264
          %270 = dma.hbm_to_vmem [thread:$0]  %s1, 1024, %s265, [#allocation6], 64, 64, 4
        $region16: #{tpu_custom_call.1} parent=11 // pred_fallthru
          _
        // Predicated region
        $region17: #{tpu_custom_call.1} parent=11 // pred_check
          %p271 = pneg %p91
        $region18: #{tpu_custom_call.1} parent=11 // pred_check_branch
          %273 = sbr.rel (%p271) target = $region20
        $region19: #{tpu_custom_call.1} parent=11 // pred_region
          _
        $region20: #{tpu_custom_call.1} parent=11 // pred_fallthru
          _
        // Predicated region
        $region21: #{tpu_custom_call.1} parent=11 // pred_check
          %p274 = pneg %p112
        $region22: #{tpu_custom_call.1} parent=11 // pred_check_branch
          %276 = sbr.rel (%p274) target = $region24
        $region23: #{tpu_custom_call.1} parent=11 // pred_region
          %s278 = ssub.s32 1024, 1024
          %279 = vsyncadd [#allocation6], %s278
          %s280 = sshll.u32 [#allocation7], 4
          %s281 = int_to_ptr.vmem [resolvable:$true] %s280
          %286 = dma.hbm_to_vmem [thread:$0]  %s3, 1024, %s281, [#allocation6], 64, 64, 4
        $region24: #{tpu_custom_call.1} parent=11 // pred_fallthru
          _
        // Predicated region
        $region25: #{tpu_custom_call.1} parent=11 // pred_check
          %p287 = pneg %p133
        $region26: #{tpu_custom_call.1} parent=11 // pred_check_branch
          %289 = sbr.rel (%p287) target = $region28
        $region27: #{tpu_custom_call.1} parent=11 // pred_region
          _
        $region28: #{tpu_custom_call.1} parent=11 // pred_fallthru
          _
        // Predicated region
        $region29: #{tpu_custom_call.1} parent=11 // pred_check
          %p290 = pneg %p154
        $region30: #{tpu_custom_call.1} parent=11 // pred_check_branch
          %292 = sbr.rel (%p290) target = $region32
        $region31: #{tpu_custom_call.1} parent=11 // pred_region
          %s294 = ssub.s32 1024, 1024
          %295 = vsyncadd [#allocation9], %s294
          %s296 = sshll.u32 [#allocation8], 4
          %s297 = int_to_ptr.vmem [resolvable:$true] %s296
          %302 = dma.hbm_to_vmem [thread:$0]  %s5, 1024, %s297, [#allocation9], 64, 64, 4
        $region32: #{tpu_custom_call.1} parent=11 // pred_fallthru
          _
        // Predicated region
        $region33: #{tpu_custom_call.1} parent=11 // pred_check
          %p303 = pneg %p175
        $region34: #{tpu_custom_call.1} parent=11 // pred_check_branch
          %305 = sbr.rel (%p303) target = $region36
        $region35: #{tpu_custom_call.1} parent=11 // pred_region
          _
        $region36: #{tpu_custom_call.1} parent=11 // pred_fallthru
          _
        // Predicated region
        $region37: #{tpu_custom_call.1} parent=11 // pred_check
          %p306 = pneg %p196
        $region38: #{tpu_custom_call.1} parent=11 // pred_check_branch
          %308 = sbr.rel (%p306) target = $region40
        $region39: #{tpu_custom_call.1} parent=11 // pred_region
          %s310 = ssub.s32 1024, 1024
          %311 = vsyncadd [#allocation9], %s310
          %s312 = sshll.u32 [#allocation10], 4
          %s313 = int_to_ptr.vmem [resolvable:$true] %s312
          %318 = dma.hbm_to_vmem [thread:$0]  %s7, 1024, %s313, [#allocation9], 64, 64, 4
        $region40: #{tpu_custom_call.1} parent=11 // pred_fallthru
          _
        // Predicated region
        $region41: #{tpu_custom_call.1} parent=11 // pred_check
          %p319 = pneg %p217
        $region42: #{tpu_custom_call.1} parent=11 // pred_check_branch
          %321 = sbr.rel (%p319) target = $region44
        $region43: #{tpu_custom_call.1} parent=11 // pred_region
          _
        $region44: #{tpu_custom_call.1} parent=11 // pred_fallthru
          _
      $region12: #{tpu_custom_call.1} parent=5 // pred_fallthru
        _
      %p322 = scmp.lt.s32.totalorder %s23, 2
      // Predicated region
      $region45: #{tpu_custom_call.1} parent=5 // pred_check
        %p323 = pneg %p322
      $region46: #{tpu_custom_call.1} parent=5 // pred_check_branch
        %325 = sbr.rel (%p323) target = $region48
      $region47: #{tpu_custom_call.1} parent=5 // pred_region
        // Predicated region
        $region49: #{tpu_custom_call.1} parent=47 // pred_check
          %p326 = pneg %p43
        $region50: #{tpu_custom_call.1} parent=47 // pred_check_branch
          %328 = sbr.rel (%p326) target = $region52
        $region51: #{tpu_custom_call.1} parent=47 // pred_region
          %s329 = sand.u32 %s33, 1
          %s330 = scalar_lea.sflag [#allocation3], %s329
          %s331 = sand.u32 %s33, 1
          %s332 = smul.addr %s331, 56
          %s333 = scalar_lea.vmem [#allocation2], %s332
          %s334 = smul.u32 14, %s23
          %s336 = ssub.s32 896, 896
          %337 = vsyncadd %s330, %s336
          %s338 = smul.addr %s334, 64
          %s339 = scalar_lea.hbm %s0, %s338
          %s340 = sshll.u32 %s333, 4
          %s341 = int_to_ptr.vmem [resolvable:$true] %s340
          %346 = dma.hbm_to_vmem [thread:$0]  %s339, 896, %s341, %s330, 64, 64, 4
        $region52: #{tpu_custom_call.1} parent=47 // pred_fallthru
          _
      $region48: #{tpu_custom_call.1} parent=5 // pred_fallthru
        _
      %p347 = scmp.le.s32.totalorder 1, %s23
      %p348 = scmp.lt.s32.totalorder %s23, 3
      %p349 = pnand %p347, %p348
      %p350 = pneg %p349
      // Predicated region
      $region53: #{tpu_custom_call.1} parent=5 // pred_check
        _
      $region54: #{tpu_custom_call.1} parent=5 // pred_check_branch
        %352 = sbr.rel (%p349) target = $region56
      $region55: #{tpu_custom_call.1} parent=5 // pred_region
        %s353 = ssub.s32 %s23, 1
        %s354 = sand.u32 %s36, 1
        %s355 = scalar_lea.sflag [#allocation3], %s354
        %s356 = sand.u32 %s36, 1
        %s357 = smul.addr %s356, 56
        %s358 = scalar_lea.vmem [#allocation2], %s357
        // Predicated region
        $region57: #{tpu_custom_call.1} parent=55 // pred_check
          %p359 = pneg %p49
        $region58: #{tpu_custom_call.1} parent=55 // pred_check_branch
          %361 = sbr.rel (%p359) target = $region60
        $region59: #{tpu_custom_call.1} parent=55 // pred_region
          %362 = dma.done %s355, 896
        $region60: #{tpu_custom_call.1} parent=55 // pred_fallthru
          _
        // Predicated region
        $region61: #{tpu_custom_call.1} parent=55 // pred_check
          %p363 = pneg %p70
        $region62: #{tpu_custom_call.1} parent=55 // pred_check_branch
          %365 = sbr.rel (%p363) target = $region64
        $region63: #{tpu_custom_call.1} parent=55 // pred_region
          %366 = dma.done [#allocation6], 1024
        $region64: #{tpu_custom_call.1} parent=55 // pred_fallthru
          _
        // Predicated region
        $region65: #{tpu_custom_call.1} parent=55 // pred_check
          %p367 = pneg %p112
        $region66: #{tpu_custom_call.1} parent=55 // pred_check_branch
          %369 = sbr.rel (%p367) target = $region68
        $region67: #{tpu_custom_call.1} parent=55 // pred_region
          %370 = dma.done [#allocation6], 1024
        $region68: #{tpu_custom_call.1} parent=55 // pred_fallthru
          _
        // Predicated region
        $region69: #{tpu_custom_call.1} parent=55 // pred_check
          %p371 = pneg %p154
        $region70: #{tpu_custom_call.1} parent=55 // pred_check_branch
          %373 = sbr.rel (%p371) target = $region72
        $region71: #{tpu_custom_call.1} parent=55 // pred_region
          %374 = dma.done [#allocation9], 1024
        $region72: #{tpu_custom_call.1} parent=55 // pred_fallthru
          _
        // Predicated region
        $region73: #{tpu_custom_call.1} parent=55 // pred_check
          %p375 = pneg %p196
        $region74: #{tpu_custom_call.1} parent=55 // pred_check_branch
          %377 = sbr.rel (%p375) target = $region76
        $region75: #{tpu_custom_call.1} parent=55 // pred_region
          %378 = dma.done [#allocation9], 1024
        $region76: #{tpu_custom_call.1} parent=55 // pred_fallthru
          _
        %s379 = sand.u32 %s36, 1
        %s380 = scalar_lea.sflag [#allocation3], %s379
        %s381 = sand.u32 %s36, 1
        %s382 = smul.addr %s381, 56
        %s383 = scalar_lea.vmem [#allocation2], %s382
        %p384 = pneg %p49
        %p385 = pneg %p46
        %p386 = pneg %p70
        %p387 = pneg %p67
        %p388 = pneg %p91
        %p389 = pneg %p88
        %p390 = pneg %p112
        %p391 = pneg %p109
        %p392 = pneg %p133
        %p393 = pneg %p130
        %p394 = pneg %p154
        %p395 = pneg %p151
        %p396 = pneg %p175
        %p397 = pneg %p172
        %p398 = pneg %p196
        %p399 = pneg %p193
        %p400 = pneg %p217
        %p401 = pneg %p214
        %p402 = pneg %p243
        %p403 = pneg %p240
        %s404 = sand.u32 %s230, 1
        %s405 = scalar_lea.sflag [#allocation4], %s404
        %s406 = sand.u32 %s230, 1
        %s407 = smul.addr %s406, 112
        %s408 = scalar_lea.vmem [#allocation11], %s407
        %s409 = smul.u32 14, %s28
        %s410 = smul.u32 14, %s28
        %v412 = vld [vmem:[%s358] sm:$0xf]
        %v413 = vld [vmem:[%s358 + $0x4] sm:$0xf]
        %v414 = vld [vmem:[%s358 + $0x8] sm:$0xf]
        %v415 = vld [vmem:[%s358 + $0xc] sm:$0xf]
        %v416 = vld [vmem:[%s358 + $0x10] sm:$0xf]
        %v417 = vld [vmem:[%s358 + $0x14] sm:$0xf]
        %v418 = vld [vmem:[%s358 + $0x18] sm:$0xf]
        %v419 = vld [vmem:[%s358 + $0x1c] sm:$0xf]
        %v420 = vld [vmem:[%s358 + $0x20] sm:$0xf]
        %v421 = vld [vmem:[%s358 + $0x24] sm:$0xf]
        %v422 = vld [vmem:[%s358 + $0x28] sm:$0xf]
        %v423 = vld [vmem:[%s358 + $0x2c] sm:$0xf]
        %v424 = vld [vmem:[%s358 + $0x30] sm:$0xf]
        %v425 = vld [vmem:[%s358 + $0x34] sm:$0xf]
        %v426 = vld [vmem:[#allocation5] sm:$0xf]
        %v427 = vld [vmem:[#allocation5 + $0x4] sm:$0xf]
        %v428 = vld [vmem:[#allocation5 + $0x8] sm:$0xf]
        %v429 = vld [vmem:[#allocation5 + $0xc] sm:$0xf]
        %v430 = vld [vmem:[#allocation5 + $0x10] sm:$0xf]
        %v431 = vld [vmem:[#allocation5 + $0x14] sm:$0xf]
        %v432 = vld [vmem:[#allocation5 + $0x18] sm:$0xf]
        %v433 = vld [vmem:[#allocation5 + $0x1c] sm:$0xf]
        %v434 = vld [vmem:[#allocation5 + $0x20] sm:$0xf]
        %v435 = vld [vmem:[#allocation5 + $0x24] sm:$0xf]
        %v436 = vld [vmem:[#allocation5 + $0x28] sm:$0xf]
        %v437 = vld [vmem:[#allocation5 + $0x2c] sm:$0xf]
        %v438 = vld [vmem:[#allocation5 + $0x30] sm:$0xf]
        %v439 = vld [vmem:[#allocation5 + $0x34] sm:$0xf]
        %v440 = vld [vmem:[#allocation5 + $0x38] sm:$0xf]
        %v441 = vld [vmem:[#allocation5 + $0x3c] sm:$0xf]
        %v442 = vld [vmem:[%s2] sm:$0x1]
        %v444 = vlaneseq
        %v445 = vshrl.u32 %v444, 7
        %v446 = vsub.s32 0, %v445
        %v447 = vrot.slane %v442, %v446
        %v463 = vunpack.c.l.b16 %v412
        %v464 = vunpack.c.l.b16 %v413
        %v465 = vunpack.c.l.b16 %v414
        %v466 = vunpack.c.l.b16 %v415
        %v467 = vunpack.c.l.b16 %v416
        %v468 = vunpack.c.l.b16 %v417
        %v469 = vunpack.c.l.b16 %v418
        %v470 = vunpack.c.l.b16 %v419
        %v471 = vunpack.c.l.b16 %v420
        %v472 = vunpack.c.l.b16 %v421
        %v473 = vunpack.c.l.b16 %v422
        %v474 = vunpack.c.l.b16 %v423
        %v475 = vunpack.c.l.b16 %v424
        %v476 = vunpack.c.l.b16 %v425
        %v477 = vpack.c.b16 %v464, %v463
        %v478 = vpack.c.b16 %v466, %v465
        %v479 = vpack.c.b16 %v468, %v467
        %v480 = vpack.c.b16 %v470, %v469
        %v481 = vpack.c.b16 %v472, %v471
        %v482 = vpack.c.b16 %v474, %v473
        %v483 = vpack.c.b16 %v476, %v475
        %v507 = vunpack.c.l.b16 %v426
        %v508 = vunpack.c.l.b16 %v427
        %v509 = vunpack.c.l.b16 %v428
        %v510 = vunpack.c.l.b16 %v429
        %v511 = vunpack.c.l.b16 %v430
        %v512 = vunpack.c.l.b16 %v431
        %v513 = vunpack.c.l.b16 %v432
        %v514 = vunpack.c.l.b16 %v433
        %v515 = vunpack.c.l.b16 %v434
        %v516 = vunpack.c.l.b16 %v435
        %v517 = vunpack.c.l.b16 %v436
        %v518 = vunpack.c.l.b16 %v437
        %v519 = vunpack.c.l.b16 %v438
        %v520 = vunpack.c.l.b16 %v439
        %v521 = vunpack.c.l.b16 %v440
        %v522 = vunpack.c.l.b16 %v441
        %v523 = vpack.c.b16 %v508, %v507
        %v524 = vpack.c.b16 %v510, %v509
        %v525 = vpack.c.b16 %v512, %v511
        %v526 = vpack.c.b16 %v514, %v513
        %v527 = vpack.c.b16 %v516, %v515
        %v528 = vpack.c.b16 %v518, %v517
        %v529 = vpack.c.b16 %v520, %v519
        %v530 = vpack.c.b16 %v522, %v521
        %539 = vmatprep.subr.bf16.mxu0 0
        %540 = vmatpush1.bf16.msra.mxu0 %v523
        %541 = vmatprep.subr.bf16.mxu0 0
        %542 = vmatpush1.bf16.msra.mxu0 %v524
        %543 = vmatprep.subr.bf16.mxu0 0
        %544 = vmatpush1.bf16.msra.mxu0 %v525
        %545 = vmatprep.subr.bf16.mxu0 0
        %546 = vmatpush1.bf16.msra.mxu0 %v526
        %547 = vmatprep.subr.bf16.mxu0 0
        %548 = vmatpush1.bf16.msra.mxu0 %v527
        %549 = vmatprep.subr.bf16.mxu0 0
        %550 = vmatpush1.bf16.msra.mxu0 %v528
        %551 = vmatprep.subr.bf16.mxu0 0
        %552 = vmatpush1.bf16.msra.mxu0 %v529
        %553 = vmatprep.subr.bf16.mxu0 0
        %554 = vmatpush1.bf16.msra.mxu0 %v530
        %555 = vmatprep.subr.bf16.mxu0 0
        %556 = vmatpush1.bf16.msra.mxu0 0
        %557 = vmatprep.subr.bf16.mxu0 0
        %558 = vmatpush1.bf16.msra.mxu0 0
        %559 = vmatprep.subr.bf16.mxu0 0
        %560 = vmatpush1.bf16.msra.mxu0 0
        %561 = vmatprep.subr.bf16.mxu0 0
        %562 = vmatpush1.bf16.msra.mxu0 0
        %563 = vmatprep.subr.bf16.mxu0 0
        %564 = vmatpush1.bf16.msra.mxu0 0
        %565 = vmatprep.subr.bf16.mxu0 0
        %566 = vmatpush1.bf16.msra.mxu0 0
        %567 = vmatprep.subr.bf16.mxu0 0
        %568 = vmatpush1.bf16.msra.mxu0 0
        %569 = vmatprep.subr.bf16.mxu0 0
        %570 = vmatpush1.bf16.msra.mxu0 0
        %571 = vmatprep.mubr.bf16.mxu0 0
        %572 = vmatmul.mubr.bf16.gmra.mrb[0].mxu0 %v477
        %v573 = vpop.f32.mrb[0].mxu0
        %v574 = vadd.f32 %v447, %v573
        %v575 = vpop.f32.mrb[0].mxu0
        %v576 = vpop.f32.mrb[0].mxu0
        %v577 = vadd.f32 %v447, %v576
        %v578 = vpop.f32.mrb[0].mxu0
        %579 = vmatprep.mubr.bf16.mxu0 0
        %580 = vmatmul.mubr.bf16.gmra.mrb[0].mxu0 %v478
        %v581 = vpop.f32.mrb[0].mxu0
        %v582 = vadd.f32 %v447, %v581
        %v583 = vpop.f32.mrb[0].mxu0
        %v584 = vpop.f32.mrb[0].mxu0
        %v585 = vadd.f32 %v447, %v584
        %v586 = vpop.f32.mrb[0].mxu0
        %587 = vmatprep.mubr.bf16.mxu0 0
        %588 = vmatmul.mubr.bf16.gmra.mrb[0].mxu0 %v479
        %v589 = vpop.f32.mrb[0].mxu0
        %v590 = vadd.f32 %v447, %v589
        %v591 = vpop.f32.mrb[0].mxu0
        %v592 = vpop.f32.mrb[0].mxu0
        %v593 = vadd.f32 %v447, %v592
        %v594 = vpop.f32.mrb[0].mxu0
        %595 = vmatprep.mubr.bf16.mxu0 0
        %596 = vmatmul.mubr.bf16.gmra.mrb[0].mxu0 %v480
        %v597 = vpop.f32.mrb[0].mxu0
        %v598 = vadd.f32 %v447, %v597
        %v599 = vpop.f32.mrb[0].mxu0
        %v600 = vpop.f32.mrb[0].mxu0
        %v601 = vadd.f32 %v447, %v600
        %v602 = vpop.f32.mrb[0].mxu0
        %603 = vmatprep.mubr.bf16.mxu0 0
        %604 = vmatmul.mubr.bf16.gmra.mrb[0].mxu0 %v481
        %v605 = vpop.f32.mrb[0].mxu0
        %v606 = vadd.f32 %v447, %v605
        %v607 = vpop.f32.mrb[0].mxu0
        %v608 = vpop.f32.mrb[0].mxu0
        %v609 = vadd.f32 %v447, %v608
        %v610 = vpop.f32.mrb[0].mxu0
        %611 = vmatprep.mubr.bf16.mxu0 0
        %612 = vmatmul.mubr.bf16.gmra.mrb[0].mxu0 %v482
        %v613 = vpop.f32.mrb[0].mxu0
        %v614 = vadd.f32 %v447, %v613
        %v615 = vpop.f32.mrb[0].mxu0
        %v616 = vpop.f32.mrb[0].mxu0
        %v617 = vadd.f32 %v447, %v616
        %v618 = vpop.f32.mrb[0].mxu0
        %619 = vmatprep.mubr.bf16.mxu0 0
        %620 = vmatmul.mubr.bf16.gmra.mrb[0].mxu0 %v483
        %v621 = vpop.f32.mrb[0].mxu0
        %v622 = vadd.f32 %v447, %v621
        %v623 = vpop.f32.mrb[0].mxu0
        %v624 = vpop.f32.mrb[0].mxu0
        %v625 = vadd.f32 %v447, %v624
        %v626 = vpop.f32.mrb[0].mxu0
        %627 = vdwg.mxu0
        %v628 = vsub.f32 0.0, %v574
        %v629 = vsub.f32 0.0, %v577
        %v630 = vsub.f32 0.0, %v582
        %v631 = vsub.f32 0.0, %v585
        %v632 = vsub.f32 0.0, %v590
        %v633 = vsub.f32 0.0, %v593
        %v634 = vsub.f32 0.0, %v598
        %v635 = vsub.f32 0.0, %v601
        %v636 = vsub.f32 0.0, %v606
        %v637 = vsub.f32 0.0, %v609
        %v638 = vsub.f32 0.0, %v614
        %v639 = vsub.f32 0.0, %v617
        %v640 = vsub.f32 0.0, %v622
        %v641 = vsub.f32 0.0, %v625
        %v642 = vmul.f32 %v628, 1.442695
        %v643 = vpow.pop %v642
        %v644 = vmul.f32 %v629, 1.442695
        %v645 = vpow.pop %v644
        %v646 = vmul.f32 %v630, 1.442695
        %v647 = vpow.pop %v646
        %v648 = vmul.f32 %v631, 1.442695
        %v649 = vpow.pop %v648
        %v650 = vmul.f32 %v632, 1.442695
        %v651 = vpow.pop %v650
        %v652 = vmul.f32 %v633, 1.442695
        %v653 = vpow.pop %v652
        %v654 = vmul.f32 %v634, 1.442695
        %v655 = vpow.pop %v654
        %v656 = vmul.f32 %v635, 1.442695
        %v657 = vpow.pop %v656
        %v658 = vmul.f32 %v636, 1.442695
        %v659 = vpow.pop %v658
        %v660 = vmul.f32 %v637, 1.442695
        %v661 = vpow.pop %v660
        %v662 = vmul.f32 %v638, 1.442695
        %v663 = vpow.pop %v662
        %v664 = vmul.f32 %v639, 1.442695
        %v665 = vpow.pop %v664
        %v666 = vmul.f32 %v640, 1.442695
        %v667 = vpow.pop %v666
        %v668 = vmul.f32 %v641, 1.442695
        %v669 = vpow.pop %v668
        %v670 = vadd.f32 %v643, 1.0
        %v671 = vadd.f32 %v645, 1.0
        %v672 = vadd.f32 %v647, 1.0
        %v673 = vadd.f32 %v649, 1.0
        %v674 = vadd.f32 %v651, 1.0
        %v675 = vadd.f32 %v653, 1.0
        %v676 = vadd.f32 %v655, 1.0
        %v677 = vadd.f32 %v657, 1.0
        %v678 = vadd.f32 %v659, 1.0
        %v679 = vadd.f32 %v661, 1.0
        %v680 = vadd.f32 %v663, 1.0
        %v681 = vadd.f32 %v665, 1.0
        %v682 = vadd.f32 %v667, 1.0
        %v683 = vadd.f32 %v669, 1.0
        %v684 = vrcp.pop %v670
        %v685 = vrcp.pop %v671
        %v686 = vrcp.pop %v672
        %v687 = vrcp.pop %v673
        %v688 = vrcp.pop %v674
        %v689 = vrcp.pop %v675
        %v690 = vrcp.pop %v676
        %v691 = vrcp.pop %v677
        %v692 = vrcp.pop %v678
        %v693 = vrcp.pop %v679
        %v694 = vrcp.pop %v680
        %v695 = vrcp.pop %v681
        %v696 = vrcp.pop %v682
        %v697 = vrcp.pop %v683
        %v698 = vpack.c.bf16 %v685, %v684
        %v699 = vpack.c.bf16 %v687, %v686
        %v700 = vpack.c.bf16 %v689, %v688
        %v701 = vpack.c.bf16 %v691, %v690
        %v702 = vpack.c.bf16 %v693, %v692
        %v703 = vpack.c.bf16 %v695, %v694
        %v704 = vpack.c.bf16 %v697, %v696
        %v705 = vld [vmem:[#allocation7] sm:$0xf]
        %v706 = vld [vmem:[#allocation7 + $0x4] sm:$0xf]
        %v707 = vld [vmem:[#allocation7 + $0x8] sm:$0xf]
        %v708 = vld [vmem:[#allocation7 + $0xc] sm:$0xf]
        %v709 = vld [vmem:[#allocation7 + $0x10] sm:$0xf]
        %v710 = vld [vmem:[#allocation7 + $0x14] sm:$0xf]
        %v711 = vld [vmem:[#allocation7 + $0x18] sm:$0xf]
        %v712 = vld [vmem:[#allocation7 + $0x1c] sm:$0xf]
        %v713 = vld [vmem:[#allocation7 + $0x20] sm:$0xf]
        %v714 = vld [vmem:[#allocation7 + $0x24] sm:$0xf]
        %v715 = vld [vmem:[#allocation7 + $0x28] sm:$0xf]
        %v716 = vld [vmem:[#allocation7 + $0x2c] sm:$0xf]
        %v717 = vld [vmem:[#allocation7 + $0x30] sm:$0xf]
        %v718 = vld [vmem:[#allocation7 + $0x34] sm:$0xf]
        %v719 = vld [vmem:[#allocation7 + $0x38] sm:$0xf]
        %v720 = vld [vmem:[#allocation7 + $0x3c] sm:$0xf]
        %v721 = vld [vmem:[%s4] sm:$0x1]
        %v723 = vlaneseq
        %v724 = vshrl.u32 %v723, 7
        %v725 = vsub.s32 0, %v724
        %v726 = vrot.slane %v721, %v725
        %v744 = vunpack.c.l.b16 %v705
        %v745 = vunpack.c.l.b16 %v706
        %v746 = vunpack.c.l.b16 %v707
        %v747 = vunpack.c.l.b16 %v708
        %v748 = vunpack.c.l.b16 %v709
        %v749 = vunpack.c.l.b16 %v710
        %v750 = vunpack.c.l.b16 %v711
        %v751 = vunpack.c.l.b16 %v712
        %v752 = vunpack.c.l.b16 %v713
        %v753 = vunpack.c.l.b16 %v714
        %v754 = vunpack.c.l.b16 %v715
        %v755 = vunpack.c.l.b16 %v716
        %v756 = vunpack.c.l.b16 %v717
        %v757 = vunpack.c.l.b16 %v718
        %v758 = vunpack.c.l.b16 %v719
        %v759 = vunpack.c.l.b16 %v720
        %v760 = vpack.c.b16 %v745, %v744
        %v761 = vpack.c.b16 %v747, %v746
        %v762 = vpack.c.b16 %v749, %v748
        %v763 = vpack.c.b16 %v751, %v750
        %v764 = vpack.c.b16 %v753, %v752
        %v765 = vpack.c.b16 %v755, %v754
        %v766 = vpack.c.b16 %v757, %v756
        %v767 = vpack.c.b16 %v759, %v758
        %776 = vmatprep.subr.bf16.mxu0 0
        %777 = vmatpush1.bf16.msra.mxu0 %v760
        %778 = vmatprep.subr.bf16.mxu0 0
        %779 = vmatpush1.bf16.msra.mxu0 %v761
        %780 = vmatprep.subr.bf16.mxu0 0
        %781 = vmatpush1.bf16.msra.mxu0 %v762
        %782 = vmatprep.subr.bf16.mxu0 0
        %783 = vmatpush1.bf16.msra.mxu0 %v763
        %784 = vmatprep.subr.bf16.mxu0 0
        %785 = vmatpush1.bf16.msra.mxu0 %v764
        %786 = vmatprep.subr.bf16.mxu0 0
        %787 = vmatpush1.bf16.msra.mxu0 %v765
        %788 = vmatprep.subr.bf16.mxu0 0
        %789 = vmatpush1.bf16.msra.mxu0 %v766
        %790 = vmatprep.subr.bf16.mxu0 0
        %791 = vmatpush1.bf16.msra.mxu0 %v767
        %792 = vmatprep.subr.bf16.mxu0 0
        %793 = vmatpush1.bf16.msra.mxu0 0
        %794 = vmatprep.subr.bf16.mxu0 0
        %795 = vmatpush1.bf16.msra.mxu0 0
        %796 = vmatprep.subr.bf16.mxu0 0
        %797 = vmatpush1.bf16.msra.mxu0 0
        %798 = vmatprep.subr.bf16.mxu0 0
        %799 = vmatpush1.bf16.msra.mxu0 0
        %800 = vmatprep.subr.bf16.mxu0 0
        %801 = vmatpush1.bf16.msra.mxu0 0
        %802 = vmatprep.subr.bf16.mxu0 0
        %803 = vmatpush1.bf16.msra.mxu0 0
        %804 = vmatprep.subr.bf16.mxu0 0
        %805 = vmatpush1.bf16.msra.mxu0 0
        %806 = vmatprep.subr.bf16.mxu0 0
        %807 = vmatpush1.bf16.msra.mxu0 0
        %808 = vmatprep.mubr.bf16.mxu0 0
        %809 = vmatmul.mubr.bf16.gmra.mrb[0].mxu0 %v698
        %v810 = vpop.f32.mrb[0].mxu0
        %v811 = vadd.f32 %v726, %v810
        %v812 = vpop.f32.mrb[0].mxu0
        %v813 = vpop.f32.mrb[0].mxu0
        %v814 = vadd.f32 %v726, %v813
        %v815 = vpop.f32.mrb[0].mxu0
        %816 = vmatprep.mubr.bf16.mxu0 0
        %817 = vmatmul.mubr.bf16.gmra.mrb[0].mxu0 %v699
        %v818 = vpop.f32.mrb[0].mxu0
        %v819 = vadd.f32 %v726, %v818
        %v820 = vpop.f32.mrb[0].mxu0
        %v821 = vpop.f32.mrb[0].mxu0
        %v822 = vadd.f32 %v726, %v821
        %v823 = vpop.f32.mrb[0].mxu0
        %824 = vmatprep.mubr.bf16.mxu0 0
        %825 = vmatmul.mubr.bf16.gmra.mrb[0].mxu0 %v700
        %v826 = vpop.f32.mrb[0].mxu0
        %v827 = vadd.f32 %v726, %v826
        %v828 = vpop.f32.mrb[0].mxu0
        %v829 = vpop.f32.mrb[0].mxu0
        %v830 = vadd.f32 %v726, %v829
        %v831 = vpop.f32.mrb[0].mxu0
        %832 = vmatprep.mubr.bf16.mxu0 0
        %833 = vmatmul.mubr.bf16.gmra.mrb[0].mxu0 %v701
        %v834 = vpop.f32.mrb[0].mxu0
        %v835 = vadd.f32 %v726, %v834
        %v836 = vpop.f32.mrb[0].mxu0
        %v837 = vpop.f32.mrb[0].mxu0
        %v838 = vadd.f32 %v726, %v837
        %v839 = vpop.f32.mrb[0].mxu0
        %840 = vmatprep.mubr.bf16.mxu0 0
        %841 = vmatmul.mubr.bf16.gmra.mrb[0].mxu0 %v702
        %v842 = vpop.f32.mrb[0].mxu0
        %v843 = vadd.f32 %v726, %v842
        %v844 = vpop.f32.mrb[0].mxu0
        %v845 = vpop.f32.mrb[0].mxu0
        %v846 = vadd.f32 %v726, %v845
        %v847 = vpop.f32.mrb[0].mxu0
        %848 = vmatprep.mubr.bf16.mxu0 0
        %849 = vmatmul.mubr.bf16.gmra.mrb[0].mxu0 %v703
        %v850 = vpop.f32.mrb[0].mxu0
        %v851 = vadd.f32 %v726, %v850
        %v852 = vpop.f32.mrb[0].mxu0
        %v853 = vpop.f32.mrb[0].mxu0
        %v854 = vadd.f32 %v726, %v853
        %v855 = vpop.f32.mrb[0].mxu0
        %856 = vmatprep.mubr.bf16.mxu0 0
        %857 = vmatmul.mubr.bf16.gmra.mrb[0].mxu0 %v704
        %v858 = vpop.f32.mrb[0].mxu0
        %v859 = vadd.f32 %v726, %v858
        %v860 = vpop.f32.mrb[0].mxu0
        %v861 = vpop.f32.mrb[0].mxu0
        %v862 = vadd.f32 %v726, %v861
        %v863 = vpop.f32.mrb[0].mxu0
        %864 = vdwg.mxu0
        %v865 = vsub.f32 0.0, %v811
        %v866 = vsub.f32 0.0, %v814
        %v867 = vsub.f32 0.0, %v819
        %v868 = vsub.f32 0.0, %v822
        %v869 = vsub.f32 0.0, %v827
        %v870 = vsub.f32 0.0, %v830
        %v871 = vsub.f32 0.0, %v835
        %v872 = vsub.f32 0.0, %v838
        %v873 = vsub.f32 0.0, %v843
        %v874 = vsub.f32 0.0, %v846
        %v875 = vsub.f32 0.0, %v851
        %v876 = vsub.f32 0.0, %v854
        %v877 = vsub.f32 0.0, %v859
        %v878 = vsub.f32 0.0, %v862
        %v879 = vmul.f32 %v865, 1.442695
        %v880 = vpow.pop %v879
        %v881 = vmul.f32 %v866, 1.442695
        %v882 = vpow.pop %v881
        %v883 = vmul.f32 %v867, 1.442695
        %v884 = vpow.pop %v883
        %v885 = vmul.f32 %v868, 1.442695
        %v886 = vpow.pop %v885
        %v887 = vmul.f32 %v869, 1.442695
        %v888 = vpow.pop %v887
        %v889 = vmul.f32 %v870, 1.442695
        %v890 = vpow.pop %v889
        %v891 = vmul.f32 %v871, 1.442695
        %v892 = vpow.pop %v891
        %v893 = vmul.f32 %v872, 1.442695
        %v894 = vpow.pop %v893
        %v895 = vmul.f32 %v873, 1.442695
        %v896 = vpow.pop %v895
        %v897 = vmul.f32 %v874, 1.442695
        %v898 = vpow.pop %v897
        %v899 = vmul.f32 %v875, 1.442695
        %v900 = vpow.pop %v899
        %v901 = vmul.f32 %v876, 1.442695
        %v902 = vpow.pop %v901
        %v903 = vmul.f32 %v877, 1.442695
        %v904 = vpow.pop %v903
        %v905 = vmul.f32 %v878, 1.442695
        %v906 = vpow.pop %v905
        %v907 = vadd.f32 %v880, 1.0
        %v908 = vadd.f32 %v882, 1.0
        %v909 = vadd.f32 %v884, 1.0
        %v910 = vadd.f32 %v886, 1.0
        %v911 = vadd.f32 %v888, 1.0
        %v912 = vadd.f32 %v890, 1.0
        %v913 = vadd.f32 %v892, 1.0
        %v914 = vadd.f32 %v894, 1.0
        %v915 = vadd.f32 %v896, 1.0
        %v916 = vadd.f32 %v898, 1.0
        %v917 = vadd.f32 %v900, 1.0
        %v918 = vadd.f32 %v902, 1.0
        %v919 = vadd.f32 %v904, 1.0
        %v920 = vadd.f32 %v906, 1.0
        %v921 = vrcp.pop %v907
        %v922 = vrcp.pop %v908
        %v923 = vrcp.pop %v909
        %v924 = vrcp.pop %v910
        %v925 = vrcp.pop %v911
        %v926 = vrcp.pop %v912
        %v927 = vrcp.pop %v913
        %v928 = vrcp.pop %v914
        %v929 = vrcp.pop %v915
        %v930 = vrcp.pop %v916
        %v931 = vrcp.pop %v917
        %v932 = vrcp.pop %v918
        %v933 = vrcp.pop %v919
        %v934 = vrcp.pop %v920
        %v935 = vpack.c.bf16 %v922, %v921
        %v936 = vpack.c.bf16 %v924, %v923
        %v937 = vpack.c.bf16 %v926, %v925
        %v938 = vpack.c.bf16 %v928, %v927
        %v939 = vpack.c.bf16 %v930, %v929
        %v940 = vpack.c.bf16 %v932, %v931
        %v941 = vpack.c.bf16 %v934, %v933
        %v942 = vld [vmem:[#allocation8] sm:$0xf]
        %v943 = vld [vmem:[#allocation8 + $0x4] sm:$0xf]
        %v944 = vld [vmem:[#allocation8 + $0x8] sm:$0xf]
        %v945 = vld [vmem:[#allocation8 + $0xc] sm:$0xf]
        %v946 = vld [vmem:[#allocation8 + $0x10] sm:$0xf]
        %v947 = vld [vmem:[#allocation8 + $0x14] sm:$0xf]
        %v948 = vld [vmem:[#allocation8 + $0x18] sm:$0xf]
        %v949 = vld [vmem:[#allocation8 + $0x1c] sm:$0xf]
        %v950 = vld [vmem:[#allocation8 + $0x20] sm:$0xf]
        %v951 = vld [vmem:[#allocation8 + $0x24] sm:$0xf]
        %v952 = vld [vmem:[#allocation8 + $0x28] sm:$0xf]
        %v953 = vld [vmem:[#allocation8 + $0x2c] sm:$0xf]
        %v954 = vld [vmem:[#allocation8 + $0x30] sm:$0xf]
        %v955 = vld [vmem:[#allocation8 + $0x34] sm:$0xf]
        %v956 = vld [vmem:[#allocation8 + $0x38] sm:$0xf]
        %v957 = vld [vmem:[#allocation8 + $0x3c] sm:$0xf]
        %v958 = vld [vmem:[%s6] sm:$0x1]
        %v960 = vlaneseq
        %v961 = vshrl.u32 %v960, 7
        %v962 = vsub.s32 0, %v961
        %v963 = vrot.slane %v958, %v962
        %v981 = vunpack.c.l.b16 %v942
        %v982 = vunpack.c.l.b16 %v943
        %v983 = vunpack.c.l.b16 %v944
        %v984 = vunpack.c.l.b16 %v945
        %v985 = vunpack.c.l.b16 %v946
        %v986 = vunpack.c.l.b16 %v947
        %v987 = vunpack.c.l.b16 %v948
        %v988 = vunpack.c.l.b16 %v949
        %v989 = vunpack.c.l.b16 %v950
        %v990 = vunpack.c.l.b16 %v951
        %v991 = vunpack.c.l.b16 %v952
        %v992 = vunpack.c.l.b16 %v953
        %v993 = vunpack.c.l.b16 %v954
        %v994 = vunpack.c.l.b16 %v955
        %v995 = vunpack.c.l.b16 %v956
        %v996 = vunpack.c.l.b16 %v957
        %v997 = vpack.c.b16 %v982, %v981
        %v998 = vpack.c.b16 %v984, %v983
        %v999 = vpack.c.b16 %v986, %v985
        %v1000 = vpack.c.b16 %v988, %v987
        %v1001 = vpack.c.b16 %v990, %v989
        %v1002 = vpack.c.b16 %v992, %v991
        %v1003 = vpack.c.b16 %v994, %v993
        %v1004 = vpack.c.b16 %v996, %v995
        %1013 = vmatprep.subr.bf16.mxu0 0
        %1014 = vmatpush1.bf16.msra.mxu0 %v997
        %1015 = vmatprep.subr.bf16.mxu0 0
        %1016 = vmatpush1.bf16.msra.mxu0 %v998
        %1017 = vmatprep.subr.bf16.mxu0 0
        %1018 = vmatpush1.bf16.msra.mxu0 %v999
        %1019 = vmatprep.subr.bf16.mxu0 0
        %1020 = vmatpush1.bf16.msra.mxu0 %v1000
        %1021 = vmatprep.subr.bf16.mxu0 0
        %1022 = vmatpush1.bf16.msra.mxu0 %v1001
        %1023 = vmatprep.subr.bf16.mxu0 0
        %1024 = vmatpush1.bf16.msra.mxu0 %v1002
        %1025 = vmatprep.subr.bf16.mxu0 0
        %1026 = vmatpush1.bf16.msra.mxu0 %v1003
        %1027 = vmatprep.subr.bf16.mxu0 0
        %1028 = vmatpush1.bf16.msra.mxu0 %v1004
        %1029 = vmatprep.subr.bf16.mxu0 0
        %1030 = vmatpush1.bf16.msra.mxu0 0
        %1031 = vmatprep.subr.bf16.mxu0 0
        %1032 = vmatpush1.bf16.msra.mxu0 0
        %1033 = vmatprep.subr.bf16.mxu0 0
        %1034 = vmatpush1.bf16.msra.mxu0 0
        %1035 = vmatprep.subr.bf16.mxu0 0
        %1036 = vmatpush1.bf16.msra.mxu0 0
        %1037 = vmatprep.subr.bf16.mxu0 0
        %1038 = vmatpush1.bf16.msra.mxu0 0
        %1039 = vmatprep.subr.bf16.mxu0 0
        %1040 = vmatpush1.bf16.msra.mxu0 0
        %1041 = vmatprep.subr.bf16.mxu0 0
        %1042 = vmatpush1.bf16.msra.mxu0 0
        %1043 = vmatprep.subr.bf16.mxu0 0
        %1044 = vmatpush1.bf16.msra.mxu0 0
        %1045 = vmatprep.mubr.bf16.mxu0 0
        %1046 = vmatmul.mubr.bf16.gmra.mrb[0].mxu0 %v935
        %v1047 = vpop.f32.mrb[0].mxu0
        %v1048 = vadd.f32 %v963, %v1047
        %v1049 = vpop.f32.mrb[0].mxu0
        %v1050 = vpop.f32.mrb[0].mxu0
        %v1051 = vadd.f32 %v963, %v1050
        %v1052 = vpop.f32.mrb[0].mxu0
        %1053 = vmatprep.mubr.bf16.mxu0 0
        %1054 = vmatmul.mubr.bf16.gmra.mrb[0].mxu0 %v936
        %v1055 = vpop.f32.mrb[0].mxu0
        %v1056 = vadd.f32 %v963, %v1055
        %v1057 = vpop.f32.mrb[0].mxu0
        %v1058 = vpop.f32.mrb[0].mxu0
        %v1059 = vadd.f32 %v963, %v1058
        %v1060 = vpop.f32.mrb[0].mxu0
        %1061 = vmatprep.mubr.bf16.mxu0 0
        %1062 = vmatmul.mubr.bf16.gmra.mrb[0].mxu0 %v937
        %v1063 = vpop.f32.mrb[0].mxu0
        %v1064 = vadd.f32 %v963, %v1063
        %v1065 = vpop.f32.mrb[0].mxu0
        %v1066 = vpop.f32.mrb[0].mxu0
        %v1067 = vadd.f32 %v963, %v1066
        %v1068 = vpop.f32.mrb[0].mxu0
        %1069 = vmatprep.mubr.bf16.mxu0 0
        %1070 = vmatmul.mubr.bf16.gmra.mrb[0].mxu0 %v938
        %v1071 = vpop.f32.mrb[0].mxu0
        %v1072 = vadd.f32 %v963, %v1071
        %v1073 = vpop.f32.mrb[0].mxu0
        %v1074 = vpop.f32.mrb[0].mxu0
        %v1075 = vadd.f32 %v963, %v1074
        %v1076 = vpop.f32.mrb[0].mxu0
        %1077 = vmatprep.mubr.bf16.mxu0 0
        %1078 = vmatmul.mubr.bf16.gmra.mrb[0].mxu0 %v939
        %v1079 = vpop.f32.mrb[0].mxu0
        %v1080 = vadd.f32 %v963, %v1079
        %v1081 = vpop.f32.mrb[0].mxu0
        %v1082 = vpop.f32.mrb[0].mxu0
        %v1083 = vadd.f32 %v963, %v1082
        %v1084 = vpop.f32.mrb[0].mxu0
        %1085 = vmatprep.mubr.bf16.mxu0 0
        %1086 = vmatmul.mubr.bf16.gmra.mrb[0].mxu0 %v940
        %v1087 = vpop.f32.mrb[0].mxu0
        %v1088 = vadd.f32 %v963, %v1087
        %v1089 = vpop.f32.mrb[0].mxu0
        %v1090 = vpop.f32.mrb[0].mxu0
        %v1091 = vadd.f32 %v963, %v1090
        %v1092 = vpop.f32.mrb[0].mxu0
        %1093 = vmatprep.mubr.bf16.mxu0 0
        %1094 = vmatmul.mubr.bf16.gmra.mrb[0].mxu0 %v941
        %v1095 = vpop.f32.mrb[0].mxu0
        %v1096 = vadd.f32 %v963, %v1095
        %v1097 = vpop.f32.mrb[0].mxu0
        %v1098 = vpop.f32.mrb[0].mxu0
        %v1099 = vadd.f32 %v963, %v1098
        %v1100 = vpop.f32.mrb[0].mxu0
        %1101 = vdwg.mxu0
        %v1102 = vmax.f32 %v1048, 0.0
        %v1103 = vmax.f32 %v1051, 0.0
        %v1104 = vmax.f32 %v1056, 0.0
        %v1105 = vmax.f32 %v1059, 0.0
        %v1106 = vmax.f32 %v1064, 0.0
        %v1107 = vmax.f32 %v1067, 0.0
        %v1108 = vmax.f32 %v1072, 0.0
        %v1109 = vmax.f32 %v1075, 0.0
        %v1110 = vmax.f32 %v1080, 0.0
        %v1111 = vmax.f32 %v1083, 0.0
        %v1112 = vmax.f32 %v1088, 0.0
        %v1113 = vmax.f32 %v1091, 0.0
        %v1114 = vmax.f32 %v1096, 0.0
        %v1115 = vmax.f32 %v1099, 0.0
        %v1116 = vpack.c.bf16 %v1103, %v1102
        %v1117 = vpack.c.bf16 %v1105, %v1104
        %v1118 = vpack.c.bf16 %v1107, %v1106
        %v1119 = vpack.c.bf16 %v1109, %v1108
        %v1120 = vpack.c.bf16 %v1111, %v1110
        %v1121 = vpack.c.bf16 %v1113, %v1112
        %v1122 = vpack.c.bf16 %v1115, %v1114
        %v1123 = vld [vmem:[#allocation10] sm:$0xf]
        %v1124 = vld [vmem:[#allocation10 + $0x4] sm:$0xf]
        %v1125 = vld [vmem:[#allocation10 + $0x8] sm:$0xf]
        %v1126 = vld [vmem:[#allocation10 + $0xc] sm:$0xf]
        %v1127 = vld [vmem:[#allocation10 + $0x10] sm:$0xf]
        %v1128 = vld [vmem:[#allocation10 + $0x14] sm:$0xf]
        %v1129 = vld [vmem:[#allocation10 + $0x18] sm:$0xf]
        %v1130 = vld [vmem:[#allocation10 + $0x1c] sm:$0xf]
        %v1131 = vld [vmem:[#allocation10 + $0x20] sm:$0xf]
        %v1132 = vld [vmem:[#allocation10 + $0x24] sm:$0xf]
        %v1133 = vld [vmem:[#allocation10 + $0x28] sm:$0xf]
        %v1134 = vld [vmem:[#allocation10 + $0x2c] sm:$0xf]
        %v1135 = vld [vmem:[#allocation10 + $0x30] sm:$0xf]
        %v1136 = vld [vmem:[#allocation10 + $0x34] sm:$0xf]
        %v1137 = vld [vmem:[#allocation10 + $0x38] sm:$0xf]
        %v1138 = vld [vmem:[#allocation10 + $0x3c] sm:$0xf]
        %v1139 = vld [vmem:[%s8] sm:$0x1]
        %v1141 = vlaneseq
        %v1142 = vshrl.u32 %v1141, 7
        %v1143 = vsub.s32 0, %v1142
        %v1144 = vrot.slane %v1139, %v1143
        %v1162 = vunpack.c.l.b16 %v1123
        %v1163 = vunpack.c.l.b16 %v1124
        %v1164 = vunpack.c.l.b16 %v1125
        %v1165 = vunpack.c.l.b16 %v1126
        %v1166 = vunpack.c.l.b16 %v1127
        %v1167 = vunpack.c.l.b16 %v1128
        %v1168 = vunpack.c.l.b16 %v1129
        %v1169 = vunpack.c.l.b16 %v1130
        %v1170 = vunpack.c.l.b16 %v1131
        %v1171 = vunpack.c.l.b16 %v1132
        %v1172 = vunpack.c.l.b16 %v1133
        %v1173 = vunpack.c.l.b16 %v1134
        %v1174 = vunpack.c.l.b16 %v1135
        %v1175 = vunpack.c.l.b16 %v1136
        %v1176 = vunpack.c.l.b16 %v1137
        %v1177 = vunpack.c.l.b16 %v1138
        %v1178 = vpack.c.b16 %v1163, %v1162
        %v1179 = vpack.c.b16 %v1165, %v1164
        %v1180 = vpack.c.b16 %v1167, %v1166
        %v1181 = vpack.c.b16 %v1169, %v1168
        %v1182 = vpack.c.b16 %v1171, %v1170
        %v1183 = vpack.c.b16 %v1173, %v1172
        %v1184 = vpack.c.b16 %v1175, %v1174
        %v1185 = vpack.c.b16 %v1177, %v1176
        %1194 = vmatprep.subr.bf16.mxu0 0
        %1195 = vmatpush1.bf16.msra.mxu0 %v1178
        %1196 = vmatprep.subr.bf16.mxu0 0
        %1197 = vmatpush1.bf16.msra.mxu0 %v1179
        %1198 = vmatprep.subr.bf16.mxu0 0
        %1199 = vmatpush1.bf16.msra.mxu0 %v1180
        %1200 = vmatprep.subr.bf16.mxu0 0
        %1201 = vmatpush1.bf16.msra.mxu0 %v1181
        %1202 = vmatprep.subr.bf16.mxu0 0
        %1203 = vmatpush1.bf16.msra.mxu0 %v1182
        %1204 = vmatprep.subr.bf16.mxu0 0
        %1205 = vmatpush1.bf16.msra.mxu0 %v1183
        %1206 = vmatprep.subr.bf16.mxu0 0
        %1207 = vmatpush1.bf16.msra.mxu0 %v1184
        %1208 = vmatprep.subr.bf16.mxu0 0
        %1209 = vmatpush1.bf16.msra.mxu0 %v1185
        %1210 = vmatprep.subr.bf16.mxu0 0
        %1211 = vmatpush1.bf16.msra.mxu0 0
        %1212 = vmatprep.subr.bf16.mxu0 0
        %1213 = vmatpush1.bf16.msra.mxu0 0
        %1214 = vmatprep.subr.bf16.mxu0 0
        %1215 = vmatpush1.bf16.msra.mxu0 0
        %1216 = vmatprep.subr.bf16.mxu0 0
        %1217 = vmatpush1.bf16.msra.mxu0 0
        %1218 = vmatprep.subr.bf16.mxu0 0
        %1219 = vmatpush1.bf16.msra.mxu0 0
        %1220 = vmatprep.subr.bf16.mxu0 0
        %1221 = vmatpush1.bf16.msra.mxu0 0
        %1222 = vmatprep.subr.bf16.mxu0 0
        %1223 = vmatpush1.bf16.msra.mxu0 0
        %1224 = vmatprep.subr.bf16.mxu0 0
        %1225 = vmatpush1.bf16.msra.mxu0 0
        %1226 = vmatprep.mubr.bf16.mxu0 0
        %1227 = vmatmul.mubr.bf16.gmra.mrb[0].mxu0 %v1116
        %v1228 = vpop.f32.mrb[0].mxu0
        %v1229 = vadd.f32 %v1144, %v1228
        %v1230 = vpop.f32.mrb[0].mxu0
        %v1231 = vpop.f32.mrb[0].mxu0
        %v1232 = vadd.f32 %v1144, %v1231
        %v1233 = vpop.f32.mrb[0].mxu0
        %1234 = vmatprep.mubr.bf16.mxu0 0
        %1235 = vmatmul.mubr.bf16.gmra.mrb[0].mxu0 %v1117
        %v1236 = vpop.f32.mrb[0].mxu0
        %v1237 = vadd.f32 %v1144, %v1236
        %v1238 = vpop.f32.mrb[0].mxu0
        %v1239 = vpop.f32.mrb[0].mxu0
        %v1240 = vadd.f32 %v1144, %v1239
        %v1241 = vpop.f32.mrb[0].mxu0
        %1242 = vmatprep.mubr.bf16.mxu0 0
        %1243 = vmatmul.mubr.bf16.gmra.mrb[0].mxu0 %v1118
        %v1244 = vpop.f32.mrb[0].mxu0
        %v1245 = vadd.f32 %v1144, %v1244
        %v1246 = vpop.f32.mrb[0].mxu0
        %v1247 = vpop.f32.mrb[0].mxu0
        %v1248 = vadd.f32 %v1144, %v1247
        %v1249 = vpop.f32.mrb[0].mxu0
        %1250 = vmatprep.mubr.bf16.mxu0 0
        %1251 = vmatmul.mubr.bf16.gmra.mrb[0].mxu0 %v1119
        %v1252 = vpop.f32.mrb[0].mxu0
        %v1253 = vadd.f32 %v1144, %v1252
        %v1254 = vpop.f32.mrb[0].mxu0
        %v1255 = vpop.f32.mrb[0].mxu0
        %v1256 = vadd.f32 %v1144, %v1255
        %v1257 = vpop.f32.mrb[0].mxu0
        %1258 = vmatprep.mubr.bf16.mxu0 0
        %1259 = vmatmul.mubr.bf16.gmra.mrb[0].mxu0 %v1120
        %v1260 = vpop.f32.mrb[0].mxu0
        %v1261 = vadd.f32 %v1144, %v1260
        %v1262 = vpop.f32.mrb[0].mxu0
        %v1263 = vpop.f32.mrb[0].mxu0
        %v1264 = vadd.f32 %v1144, %v1263
        %v1265 = vpop.f32.mrb[0].mxu0
        %1266 = vmatprep.mubr.bf16.mxu0 0
        %1267 = vmatmul.mubr.bf16.gmra.mrb[0].mxu0 %v1121
        %v1268 = vpop.f32.mrb[0].mxu0
        %v1269 = vadd.f32 %v1144, %v1268
        %v1270 = vpop.f32.mrb[0].mxu0
        %v1271 = vpop.f32.mrb[0].mxu0
        %v1272 = vadd.f32 %v1144, %v1271
        %v1273 = vpop.f32.mrb[0].mxu0
        %1274 = vmatprep.mubr.bf16.mxu0 0
        %1275 = vmatmul.mubr.bf16.gmra.mrb[0].mxu0 %v1122
        %v1276 = vpop.f32.mrb[0].mxu0
        %v1277 = vadd.f32 %v1144, %v1276
        %v1278 = vpop.f32.mrb[0].mxu0
        %v1279 = vpop.f32.mrb[0].mxu0
        %v1280 = vadd.f32 %v1144, %v1279
        %v1281 = vpop.f32.mrb[0].mxu0
        %1282 = vdwg.mxu0
        %v1283 = vsub.f32 0.0, %v1229
        %v1284 = vsub.f32 0.0, %v1232
        %v1285 = vsub.f32 0.0, %v1237
        %v1286 = vsub.f32 0.0, %v1240
        %v1287 = vsub.f32 0.0, %v1245
        %v1288 = vsub.f32 0.0, %v1248
        %v1289 = vsub.f32 0.0, %v1253
        %v1290 = vsub.f32 0.0, %v1256
        %v1291 = vsub.f32 0.0, %v1261
        %v1292 = vsub.f32 0.0, %v1264
        %v1293 = vsub.f32 0.0, %v1269
        %v1294 = vsub.f32 0.0, %v1272
        %v1295 = vsub.f32 0.0, %v1277
        %v1296 = vsub.f32 0.0, %v1280
        %v1297 = vmul.f32 %v1283, 1.442695
        %v1298 = vpow.pop %v1297
        %v1299 = vmul.f32 %v1284, 1.442695
        %v1300 = vpow.pop %v1299
        %v1301 = vmul.f32 %v1285, 1.442695
        %v1302 = vpow.pop %v1301
        %v1303 = vmul.f32 %v1286, 1.442695
        %v1304 = vpow.pop %v1303
        %v1305 = vmul.f32 %v1287, 1.442695
        %v1306 = vpow.pop %v1305
        %v1307 = vmul.f32 %v1288, 1.442695
        %v1308 = vpow.pop %v1307
        %v1309 = vmul.f32 %v1289, 1.442695
        %v1310 = vpow.pop %v1309
        %v1311 = vmul.f32 %v1290, 1.442695
        %v1312 = vpow.pop %v1311
        %v1313 = vmul.f32 %v1291, 1.442695
        %v1314 = vpow.pop %v1313
        %v1315 = vmul.f32 %v1292, 1.442695
        %v1316 = vpow.pop %v1315
        %v1317 = vmul.f32 %v1293, 1.442695
        %v1318 = vpow.pop %v1317
        %v1319 = vmul.f32 %v1294, 1.442695
        %v1320 = vpow.pop %v1319
        %v1321 = vmul.f32 %v1295, 1.442695
        %v1322 = vpow.pop %v1321
        %v1323 = vmul.f32 %v1296, 1.442695
        %v1324 = vpow.pop %v1323
        %v1325 = vadd.f32 %v1298, 1.0
        %v1326 = vadd.f32 %v1300, 1.0
        %v1327 = vadd.f32 %v1302, 1.0
        %v1328 = vadd.f32 %v1304, 1.0
        %v1329 = vadd.f32 %v1306, 1.0
        %v1330 = vadd.f32 %v1308, 1.0
        %v1331 = vadd.f32 %v1310, 1.0
        %v1332 = vadd.f32 %v1312, 1.0
        %v1333 = vadd.f32 %v1314, 1.0
        %v1334 = vadd.f32 %v1316, 1.0
        %v1335 = vadd.f32 %v1318, 1.0
        %v1336 = vadd.f32 %v1320, 1.0
        %v1337 = vadd.f32 %v1322, 1.0
        %v1338 = vadd.f32 %v1324, 1.0
        %v1339 = vrcp.pop %v1325
        %v1340 = vrcp.pop %v1326
        %v1341 = vrcp.pop %v1327
        %v1342 = vrcp.pop %v1328
        %v1343 = vrcp.pop %v1329
        %v1344 = vrcp.pop %v1330
        %v1345 = vrcp.pop %v1331
        %v1346 = vrcp.pop %v1332
        %v1347 = vrcp.pop %v1333
        %v1348 = vrcp.pop %v1334
        %v1349 = vrcp.pop %v1335
        %v1350 = vrcp.pop %v1336
        %v1351 = vrcp.pop %v1337
        %v1352 = vrcp.pop %v1338
        %1353 = vst [vmem:[%s408] sm:$0xff] %v1339
        %1354 = vst [vmem:[%s408 + $0x8] sm:$0xff] %v1340
        %1355 = vst [vmem:[%s408 + $0x10] sm:$0xff] %v1341
        %1356 = vst [vmem:[%s408 + $0x18] sm:$0xff] %v1342
        %1357 = vst [vmem:[%s408 + $0x20] sm:$0xff] %v1343
        %1358 = vst [vmem:[%s408 + $0x28] sm:$0xff] %v1344
        %1359 = vst [vmem:[%s408 + $0x30] sm:$0xff] %v1345
        %1360 = vst [vmem:[%s408 + $0x38] sm:$0xff] %v1346
        %1361 = vst [vmem:[%s408 + $0x40] sm:$0xff] %v1347
        %1362 = vst [vmem:[%s408 + $0x48] sm:$0xff] %v1348
        %1363 = vst [vmem:[%s408 + $0x50] sm:$0xff] %v1349
        %1364 = vst [vmem:[%s408 + $0x58] sm:$0xff] %v1350
        %1365 = vst [vmem:[%s408 + $0x60] sm:$0xff] %v1351
        %1366 = vst [vmem:[%s408 + $0x68] sm:$0xff] %v1352
        %s1367 = sand.u32 %s230, 1
        %s1368 = scalar_lea.sflag [#allocation4], %s1367
        %s1369 = sand.u32 %s230, 1
        %s1370 = smul.addr %s1369, 112
        %s1371 = scalar_lea.vmem [#allocation11], %s1370
        // Predicated region
        $region77: #{tpu_custom_call.1} parent=55 // pred_check
          %p1372 = pneg %p240
        $region78: #{tpu_custom_call.1} parent=55 // pred_check_branch
          %1374 = sbr.rel (%p1372) target = $region80
        $region79: #{tpu_custom_call.1} parent=55 // pred_region
          %s1375 = smul.u32 14, %s28
          %s1377 = ssub.s32 1792, 1792
          %1378 = vsyncadd %s1368, %s1377
          %s1379 = smul.addr %s1375, 128
          %s1380 = scalar_lea.hbm %s9, %s1379
          %s1381 = sshll.u32 %s1371, 4
          %s1382 = int_to_ptr.vmem [resolvable:$true] %s1381
          %1387 = dma.vmem_to_hbm [thread:$0]  %s1382, 1792, %s1380, %s1368, 128, 128, 8
        $region80: #{tpu_custom_call.1} parent=55 // pred_fallthru
          _
      $region56: #{tpu_custom_call.1} parent=5 // pred_fallthru
        _
      %p1388 = scmp.le.s32.totalorder 2, %s23
      // Predicated region
      $region81: #{tpu_custom_call.1} parent=5 // pred_check
        %p1389 = pneg %p1388
      $region82: #{tpu_custom_call.1} parent=5 // pred_check_branch
        %1391 = sbr.rel (%p1389) target = $region84
      $region83: #{tpu_custom_call.1} parent=5 // pred_region
        %s1392 = ssub.s32 %s23, 2
        // Predicated region
        $region85: #{tpu_custom_call.1} parent=83 // pred_check
          %p1393 = pneg %p246
        $region86: #{tpu_custom_call.1} parent=83 // pred_check_branch
          %1395 = sbr.rel (%p1393) target = $region88
        $region87: #{tpu_custom_call.1} parent=83 // pred_region
          %s1396 = sand.u32 %s231, 1
          %s1397 = scalar_lea.sflag [#allocation4], %s1396
          %s1398 = sand.u32 %s231, 1
          %s1399 = smul.addr %s1398, 112
          %s1400 = scalar_lea.vmem [#allocation11], %s1399
          %1401 = dma.done %s1397, 1792
        $region88: #{tpu_custom_call.1} parent=83 // pred_fallthru
          _
      $region84: #{tpu_custom_call.1} parent=5 // pred_fallthru
        _
    $region6: #{tpu_custom_call.1} parent=1 // loop_footer
      %s27 = sadd.s32 1, %s23
    $region7: #{tpu_custom_call.1} parent=1 // loop_footer_branch
      %22 = sbr.rel target = $region3
    $region8: #{tpu_custom_call.1} parent=1 // loop_exit
      _
    %1402 = vsyncpa [#allocation3], 1
    %s1403 = scalar_lea.sflag [#allocation3], 1
    %1404 = vsyncpa %s1403, 1
    %1405 = vsyncpa [#allocation6], 1
    %1406 = vsyncpa [#allocation9], 1
    %1407 = vsyncpa [#allocation4], 1
    %s1408 = scalar_lea.sflag [#allocation4], 1
    %1409 = vsyncpa %s1408, 1

</llo_original>
